<compile_context>
chip_gen: v7x
topology: tpu7x:2x2x1
jax: 0.10.0
libtpu: 0.0.40
codegen_flags: <defaults>
</compile_context>

<pallas_src>
import functools
import math

import jax
import jax.numpy as jnp
from jax import lax
from jax.experimental import pallas as pl
from jax.experimental.pallas import tpu as pltpu


def _round_up(x, m):
    return (x + m - 1) // m * m


# --------------------------------------------------------------------------
# Kernel: expansion matmul + grouped LayerNorm (+ in-VMEM pixel shuffle).
# --------------------------------------------------------------------------

def _expand_shuffle_ln_kernel(x_ref, w_ref, m_ref, g_ref, b_ref, o_ref, *,
                              eps, p1, rows_per_tile):
    """
    x_ref : (tm, C)          tm input pixels (tm = k * W on the fused path)
    w_ref : (C, N)           expansion weight, N = p1*p2*c
    m_ref : (p2c, p2c)       block-diagonal averaging matrix (1/c inside a group)
    g_ref : (1, p2c)         LayerNorm gamma tiled over the p2 groups of a slab
    b_ref : (1, p2c)         LayerNorm beta  tiled over the p2 groups of a slab
    o_ref : (k, p1, W, p2c)  fused pixel-shuffle output        (rows_per_tile = k)
            (tm, N)          plain expanded rows (fallback)    (rows_per_tile = None)
    """
    # Expansion matmul on the MXU, f32 accumulation.
    y = jnp.dot(x_ref[...], w_ref[...], preferred_element_type=jnp.float32)   # (tm, N)
    n_slab = y.shape[-1] // p1                                                 # p2 * c

    for i1 in range(p1):                      # static unroll, p1 == dim_scale (e.g. 4)
        sl = slice(i1 * n_slab, (i1 + 1) * n_slab)
        ys = y[:, sl]                                                          # (tm, p2c)
        # Per-group mean / variance via one tiny block-diagonal averaging matmul.
        mu = jnp.dot(ys, m_ref[...], preferred_element_type=jnp.float32)
        d = ys - mu
        var = jnp.dot(d * d, m_ref[...], preferred_element_type=jnp.float32)
        out = (d * lax.rsqrt(var + eps) * g_ref[...] + b_ref[...]).astype(o_ref.dtype)
        if rows_per_tile is None:
            o_ref[:, sl] = out
        else:
            # (k*W, p2c) -> (k, W, p2c): W % 8 == 0, so this leading split is
            # layout-preserving (no relayout); the store lands the i1-th output
            # sub-row of every image row directly in its final position.
            o_ref[:, i1, :, :] = out.reshape(rows_per_tile, -1, n_slab)


# --------------------------------------------------------------------------
# Parameters + forward
# --------------------------------------------------------------------------

def init_params(key, dim, dim_scale=4):
    c = dim // dim_scale
    bound = 1.0 / math.sqrt(dim)
    # nn.Linear(dim, dim_scale*dim, bias=False): weight shape (out, in)
    w = jax.random.uniform(key, (dim_scale * dim, dim), jnp.float32, -bound, bound)
    return dict(
        wT=w.T,                                   # (dim, dim_scale*dim)
        gamma=jnp.ones((c,), jnp.float32),        # LayerNorm(dim // dim_scale)
        beta=jnp.zeros((c,), jnp.float32),
    )


def final_patch_expand2d_forward(params, x, dim_scale=4, eps=1e-5,
                                 row_tile_pixels=2048, compute_dtype=None):
    """x: (B, H, W, C) NHWC with C == dim.  Returns (B, H*s, W*s, C//s)."""
    B, H, W, C = x.shape
    assert C % dim_scale == 0, "dim must be divisible by dim_scale"
    p1 = p2 = dim_scale
    c = C // dim_scale
    N = dim_scale * C
    n_slab = p2 * c

    wT = params["wT"]                                                    # (C, N)
    # Block-diagonal averaging matrix for the grouped LayerNorm statistics.
    gid = jnp.arange(n_slab, dtype=jnp.int32) // c
    M = (gid[:, None] == gid[None, :]).astype(jnp.float32) / float(c)    # (p2c, p2c)
    gamma = jnp.tile(params["gamma"], p2)[None, :].astype(jnp.float32)   # (1, p2c)
    beta = jnp.tile(params["beta"], p2)[None, :].astype(jnp.float32)     # (1, p2c)

    x2 = x.reshape(B * H * W, C)
    if compute_dtype is not None:      # optional bf16 MXU operands (f32 accumulation)
        x2 = x2.astype(compute_dtype)
        wT = wT.astype(compute_dtype)

    common_in_specs = [
        pl.BlockSpec((None, C), lambda i: (i, 0)),          # placeholder, overwritten below
        pl.BlockSpec((C, N), lambda i: (0, 0)),             # expansion weight (resident)
        pl.BlockSpec((n_slab, n_slab), lambda i: (0, 0)),   # averaging matrix (resident)
        pl.BlockSpec((1, n_slab), lambda i: (0, 0)),        # gamma (resident)
        pl.BlockSpec((1, n_slab), lambda i: (0, 0)),        # beta  (resident)
    ]

    if W % 8 == 0:
        # ----- fused path: pixel shuffle done inside the kernel ---------------
        rows_total = B * H                       # whole image rows
        min_steps = 2 if rows_total >= 2 else 1  # keep >=2 steps for v7x megacore
        k_rows = 1
        for k in range(1, rows_total + 1):
            if (rows_total % k == 0 and k * W <= max(row_tile_pixels, W)
                    and rows_total // k >= min_steps):
                k_rows = k
        tm = k_rows * W
        grid = (rows_total // k_rows,)

        npix = rows_total * W
        cost = pl.CostEstimate(
            flops=int(2 * npix * C * N + 4 * npix * N * n_slab + 8 * npix * N),
            transcendentals=int(npix * N),
            bytes_accessed=int(4 * (npix * (C + N) + C * N + n_slab * n_slab)))

        in_specs = [pl.BlockSpec((tm, C), lambda i: (i, 0))] + common_in_specs[1:]
        out4 = pl.pallas_call(
            functools.partial(_expand_shuffle_ln_kernel, eps=eps, p1=p1,
                              rows_per_tile=k_rows),
            grid=grid,
            in_specs=in_specs,
            out_specs=pl.BlockSpec((k_rows, p1, W, n_slab), lambda i: (i, 0, 0, 0)),
            out_shape=jax.ShapeDtypeStruct((rows_total, p1, W, n_slab), jnp.float32),
            compiler_params=pltpu.CompilerParams(dimension_semantics=("parallel",)),
            cost_estimate=cost,
        )(x2, wT, M, gamma, beta)
        # (B*H, p1, W, p2*c) -> (B, H*p1, W*p2, c) is a pure reshape (no data movement).
        return out4.reshape(B, H * p1, W * p2, c)

    # ----- fallback path (W not a multiple of 8) ------------------------------
    # TODO(synk): fusing the shuffle here needs a real (k*W,p2c)->(k,W,p2c) relayout;
    #             keep the shuffle outside the kernel for odd widths.
    R = B * H * W
    tm = min(_round_up(row_tile_pixels, 8), _round_up(R, 8))
    R_pad = _round_up(R, tm)
    if R_pad != R:
        x2 = jnp.pad(x2, ((0, R_pad - R), (0, 0)))
    in_specs = [pl.BlockSpec((tm, C), lambda i: (i, 0))] + common_in_specs[1:]
    y2d = pl.pallas_call(
        functools.partial(_expand_shuffle_ln_kernel, eps=eps, p1=p1,
                          rows_per_tile=None),
        grid=(R_pad // tm,),
        in_specs=in_specs,
        out_specs=pl.BlockSpec((tm, N), lambda i: (i, 0)),
        out_shape=jax.ShapeDtypeStruct((R_pad, N), jnp.float32),
        compiler_params=pltpu.CompilerParams(dimension_semantics=("parallel",)),
    )(x2, wT, M, gamma, beta)
    y = y2d[:R].reshape(B, H, W, p1, p2, c)
    y = jnp.transpose(y, (0, 1, 3, 2, 4, 5)).reshape(B, H * p1, W * p2, c)
    return y


# --------------------------------------------------------------------------
# Pure-JAX reference (matches the PyTorch module semantics)
# --------------------------------------------------------------------------

def reference_forward(params, x, dim_scale=4, eps=1e-5):
    B, H, W, C = x.shape
    c = C // dim_scale
    y = x.reshape(-1, C) @ params["wT"]
    y = y.reshape(B, H, W, dim_scale, dim_scale, c)
    y = jnp.transpose(y, (0, 1, 3, 2, 4, 5)).reshape(B, H * dim_scale, W * dim_scale, c)
    mu = y.mean(-1, keepdims=True)
    var = jnp.mean(jnp.square(y - mu), -1, keepdims=True)
    return (y - mu) / jnp.sqrt(var + eps) * params["gamma"] + params["beta"]


# --------------------------------------------------------------------------

if __name__ == "__main__":
    key = jax.random.PRNGKey(0)
    dim, dim_scale = 32, 4            # -> c = 8, expanded N = 128
    B, H, W = 2, 8, 8

    pkey, xkey = jax.random.split(key)
    params = init_params(pkey, dim, dim_scale)
    x = jax.random.normal(xkey, (B, H, W, dim), jnp.float32)

    fwd = jax.jit(functools.partial(final_patch_expand2d_forward, dim_scale=dim_scale))
    y = jax.block_until_ready(fwd(params, x))

    y_ref = reference_forward(params, x, dim_scale=dim_scale)

    assert y.shape == (B, H * dim_scale, W * dim_scale, dim // dim_scale)
    assert y.dtype == jnp.float32
    assert bool(jnp.all(jnp.isfinite(y)))
    assert bool(jnp.allclose(y, y_ref, rtol=1e-4, atol=1e-4))
    print("KERNEL_OK")
</pallas_src>

<mosaic_0001>
module attributes {stable_mosaic.version = 11 : i64} {
  func.func @_expand_shuffle_ln_kernel(%arg0: i32, %arg1: memref<64x32xf32, #tpu.memory_space<vmem>>, %arg2: memref<32x128xf32, #tpu.memory_space<vmem>>, %arg3: memref<32x32xf32, #tpu.memory_space<vmem>>, %arg4: memref<1x32xf32, #tpu.memory_space<vmem>>, %arg5: memref<1x32xf32, #tpu.memory_space<vmem>>, %arg6: memref<8x4x8x32xf32, #tpu.memory_space<vmem>>) attributes {dimension_semantics = [#tpu.dimension_semantics<parallel>], iteration_bounds = array<i64: 2>, scalar_prefetch = 0 : i64, scratch_operands = 0 : i64, tpu.core_type = #tpu.core_type<tc>, window_params = [{transform_indices = @transform_0, window_bounds = array<i64: 64, 32>}, {pipeline_mode = #tpu.pipeline_mode<synchronous>, transform_indices = @transform_1, window_bounds = array<i64: 32, 128>}, {pipeline_mode = #tpu.pipeline_mode<synchronous>, transform_indices = @transform_2, window_bounds = array<i64: 32, 32>}, {pipeline_mode = #tpu.pipeline_mode<synchronous>, transform_indices = @transform_3, window_bounds = array<i64: 1, 32>}, {pipeline_mode = #tpu.pipeline_mode<synchronous>, transform_indices = @transform_4, window_bounds = array<i64: 1, 32>}, {transform_indices = @transform_5, window_bounds = array<i64: 8, 4, 8, 32>}]} {
    %c0 = arith.constant 0 : index
    %c0_0 = arith.constant 0 : index
    %0 = vector.load %arg1[%c0, %c0_0] : memref<64x32xf32, #tpu.memory_space<vmem>>, vector<64x32xf32>
    %c0_1 = arith.constant 0 : index
    %c0_2 = arith.constant 0 : index
    %1 = vector.load %arg2[%c0_1, %c0_2] : memref<32x128xf32, #tpu.memory_space<vmem>>, vector<32x128xf32>
    %cst = arith.constant dense<0.000000e+00> : vector<64x128xf32>
    %2 = tpu.matmul %0, %1, %cst {dimension_numbers = #tpu.dot_dimension_numbers<[1], [0], [0], [1], [0, 0, 1, 1], [], []>} : vector<64x32xf32>, vector<32x128xf32>, vector<64x128xf32> -> vector<64x128xf32>
    %3 = vector.extract_strided_slice %2 {offsets = [0, 0], sizes = [64, 32], strides = [1, 1]} : vector<64x128xf32> to vector<64x32xf32>
    %c0_3 = arith.constant 0 : index
    %c0_4 = arith.constant 0 : index
    %4 = vector.load %arg3[%c0_3, %c0_4] : memref<32x32xf32, #tpu.memory_space<vmem>>, vector<32x32xf32>
    %cst_5 = arith.constant dense<0.000000e+00> : vector<64x32xf32>
    %5 = tpu.matmul %3, %4, %cst_5 {dimension_numbers = #tpu.dot_dimension_numbers<[1], [0], [0], [1], [0, 0, 1, 1], [], []>} : vector<64x32xf32>, vector<32x32xf32>, vector<64x32xf32> -> vector<64x32xf32>
    %6 = arith.subf %3, %5 : vector<64x32xf32>
    %7 = arith.mulf %6, %6 : vector<64x32xf32>
    %c0_6 = arith.constant 0 : index
    %c0_7 = arith.constant 0 : index
    %8 = vector.load %arg3[%c0_6, %c0_7] : memref<32x32xf32, #tpu.memory_space<vmem>>, vector<32x32xf32>
    %cst_8 = arith.constant dense<0.000000e+00> : vector<64x32xf32>
    %9 = tpu.matmul %7, %8, %cst_8 {dimension_numbers = #tpu.dot_dimension_numbers<[1], [0], [0], [1], [0, 0, 1, 1], [], []>} : vector<64x32xf32>, vector<32x32xf32>, vector<64x32xf32> -> vector<64x32xf32>
    %cst_9 = arith.constant 9.99999974E-6 : f32
    %10 = vector.broadcast %cst_9 : f32 to vector<64x32xf32>
    %11 = arith.addf %9, %10 : vector<64x32xf32>
    %12 = math.rsqrt %11 : vector<64x32xf32>
    %13 = arith.mulf %6, %12 : vector<64x32xf32>
    %c0_10 = arith.constant 0 : index
    %c0_11 = arith.constant 0 : index
    %14 = vector.load %arg4[%c0_10, %c0_11] : memref<1x32xf32, #tpu.memory_space<vmem>>, vector<1x32xf32>
    %15 = vector.broadcast %14 : vector<1x32xf32> to vector<64x32xf32>
    %16 = arith.mulf %13, %15 : vector<64x32xf32>
    %c0_12 = arith.constant 0 : index
    %c0_13 = arith.constant 0 : index
    %17 = vector.load %arg5[%c0_12, %c0_13] : memref<1x32xf32, #tpu.memory_space<vmem>>, vector<1x32xf32>
    %18 = vector.broadcast %17 : vector<1x32xf32> to vector<64x32xf32>
    %19 = arith.addf %16, %18 : vector<64x32xf32>
    %20 = vector.shape_cast %19 : vector<64x32xf32> to vector<8x8x32xf32>
    %c0_14 = arith.constant 0 : index
    %c0_15 = arith.constant 0 : index
    %c0_16 = arith.constant 0 : index
    %c0_17 = arith.constant 0 : index
    %21 = vector.load %arg6[%c0_14, %c0_15, %c0_16, %c0_17] : memref<8x4x8x32xf32, #tpu.memory_space<vmem>>, vector<8x1x8x32xf32>
    %22 = vector.shape_cast %21 : vector<8x1x8x32xf32> to vector<8x8x32xf32>
    %23 = vector.shape_cast %20 : vector<8x8x32xf32> to vector<8x1x8x32xf32>
    tpu.vector_store %arg6[%c0_14, %c0_15, %c0_16, %c0_17], %23 {strides = array<i32>} : memref<8x4x8x32xf32, #tpu.memory_space<vmem>>, vector<8x1x8x32xf32>,
    %24 = vector.extract_strided_slice %2 {offsets = [0, 32], sizes = [64, 32], strides = [1, 1]} : vector<64x128xf32> to vector<64x32xf32>
    %c0_18 = arith.constant 0 : index
    %c0_19 = arith.constant 0 : index
    %25 = vector.load %arg3[%c0_18, %c0_19] : memref<32x32xf32, #tpu.memory_space<vmem>>, vector<32x32xf32>
    %cst_20 = arith.constant dense<0.000000e+00> : vector<64x32xf32>
    %26 = tpu.matmul %24, %25, %cst_20 {dimension_numbers = #tpu.dot_dimension_numbers<[1], [0], [0], [1], [0, 0, 1, 1], [], []>} : vector<64x32xf32>, vector<32x32xf32>, vector<64x32xf32> -> vector<64x32xf32>
    %27 = arith.subf %24, %26 : vector<64x32xf32>
    %28 = arith.mulf %27, %27 : vector<64x32xf32>
    %c0_21 = arith.constant 0 : index
    %c0_22 = arith.constant 0 : index
    %29 = vector.load %arg3[%c0_21, %c0_22] : memref<32x32xf32, #tpu.memory_space<vmem>>, vector<32x32xf32>
    %cst_23 = arith.constant dense<0.000000e+00> : vector<64x32xf32>
    %30 = tpu.matmul %28, %29, %cst_23 {dimension_numbers = #tpu.dot_dimension_numbers<[1], [0], [0], [1], [0, 0, 1, 1], [], []>} : vector<64x32xf32>, vector<32x32xf32>, vector<64x32xf32> -> vector<64x32xf32>
    %cst_24 = arith.constant 9.99999974E-6 : f32
    %31 = vector.broadcast %cst_24 : f32 to vector<64x32xf32>
    %32 = arith.addf %30, %31 : vector<64x32xf32>
    %33 = math.rsqrt %32 : vector<64x32xf32>
    %34 = arith.mulf %27, %33 : vector<64x32xf32>
    %c0_25 = arith.constant 0 : index
    %c0_26 = arith.constant 0 : index
    %35 = vector.load %arg4[%c0_25, %c0_26] : memref<1x32xf32, #tpu.memory_space<vmem>>, vector<1x32xf32>
    %36 = vector.broadcast %35 : vector<1x32xf32> to vector<64x32xf32>
    %37 = arith.mulf %34, %36 : vector<64x32xf32>
    %c0_27 = arith.constant 0 : index
    %c0_28 = arith.constant 0 : index
    %38 = vector.load %arg5[%c0_27, %c0_28] : memref<1x32xf32, #tpu.memory_space<vmem>>, vector<1x32xf32>
    %39 = vector.broadcast %38 : vector<1x32xf32> to vector<64x32xf32>
    %40 = arith.addf %37, %39 : vector<64x32xf32>
    %41 = vector.shape_cast %40 : vector<64x32xf32> to vector<8x8x32xf32>
    %c0_29 = arith.constant 0 : index
    %c1 = arith.constant 1 : index
    %c0_30 = arith.constant 0 : index
    %c0_31 = arith.constant 0 : index
    %42 = vector.load %arg6[%c0_29, %c1, %c0_30, %c0_31] : memref<8x4x8x32xf32, #tpu.memory_space<vmem>>, vector<8x1x8x32xf32>
    %43 = vector.shape_cast %42 : vector<8x1x8x32xf32> to vector<8x8x32xf32>
    %44 = vector.shape_cast %41 : vector<8x8x32xf32> to vector<8x1x8x32xf32>
    tpu.vector_store %arg6[%c0_29, %c1, %c0_30, %c0_31], %44 {strides = array<i32>} : memref<8x4x8x32xf32, #tpu.memory_space<vmem>>, vector<8x1x8x32xf32>,
    %45 = vector.extract_strided_slice %2 {offsets = [0, 64], sizes = [64, 32], strides = [1, 1]} : vector<64x128xf32> to vector<64x32xf32>
    %c0_32 = arith.constant 0 : index
    %c0_33 = arith.constant 0 : index
    %46 = vector.load %arg3[%c0_32, %c0_33] : memref<32x32xf32, #tpu.memory_space<vmem>>, vector<32x32xf32>
    %cst_34 = arith.constant dense<0.000000e+00> : vector<64x32xf32>
    %47 = tpu.matmul %45, %46, %cst_34 {dimension_numbers = #tpu.dot_dimension_numbers<[1], [0], [0], [1], [0, 0, 1, 1], [], []>} : vector<64x32xf32>, vector<32x32xf32>, vector<64x32xf32> -> vector<64x32xf32>
    %48 = arith.subf %45, %47 : vector<64x32xf32>
    %49 = arith.mulf %48, %48 : vector<64x32xf32>
    %c0_35 = arith.constant 0 : index
    %c0_36 = arith.constant 0 : index
    %50 = vector.load %arg3[%c0_35, %c0_36] : memref<32x32xf32, #tpu.memory_space<vmem>>, vector<32x32xf32>
    %cst_37 = arith.constant dense<0.000000e+00> : vector<64x32xf32>
    %51 = tpu.matmul %49, %50, %cst_37 {dimension_numbers = #tpu.dot_dimension_numbers<[1], [0], [0], [1], [0, 0, 1, 1], [], []>} : vector<64x32xf32>, vector<32x32xf32>, vector<64x32xf32> -> vector<64x32xf32>
    %cst_38 = arith.constant 9.99999974E-6 : f32
    %52 = vector.broadcast %cst_38 : f32 to vector<64x32xf32>
    %53 = arith.addf %51, %52 : vector<64x32xf32>
    %54 = math.rsqrt %53 : vector<64x32xf32>
    %55 = arith.mulf %48, %54 : vector<64x32xf32>
    %c0_39 = arith.constant 0 : index
    %c0_40 = arith.constant 0 : index
    %56 = vector.load %arg4[%c0_39, %c0_40] : memref<1x32xf32, #tpu.memory_space<vmem>>, vector<1x32xf32>
    %57 = vector.broadcast %56 : vector<1x32xf32> to vector<64x32xf32>
    %58 = arith.mulf %55, %57 : vector<64x32xf32>
    %c0_41 = arith.constant 0 : index
    %c0_42 = arith.constant 0 : index
    %59 = vector.load %arg5[%c0_41, %c0_42] : memref<1x32xf32, #tpu.memory_space<vmem>>, vector<1x32xf32>
    %60 = vector.broadcast %59 : vector<1x32xf32> to vector<64x32xf32>
    %61 = arith.addf %58, %60 : vector<64x32xf32>
    %62 = vector.shape_cast %61 : vector<64x32xf32> to vector<8x8x32xf32>
    %c0_43 = arith.constant 0 : index
    %c2 = arith.constant 2 : index
    %c0_44 = arith.constant 0 : index
    %c0_45 = arith.constant 0 : index
    %63 = vector.load %arg6[%c0_43, %c2, %c0_44, %c0_45] : memref<8x4x8x32xf32, #tpu.memory_space<vmem>>, vector<8x1x8x32xf32>
    %64 = vector.shape_cast %63 : vector<8x1x8x32xf32> to vector<8x8x32xf32>
    %65 = vector.shape_cast %62 : vector<8x8x32xf32> to vector<8x1x8x32xf32>
    tpu.vector_store %arg6[%c0_43, %c2, %c0_44, %c0_45], %65 {strides = array<i32>} : memref<8x4x8x32xf32, #tpu.memory_space<vmem>>, vector<8x1x8x32xf32>,
    %66 = vector.extract_strided_slice %2 {offsets = [0, 96], sizes = [64, 32], strides = [1, 1]} : vector<64x128xf32> to vector<64x32xf32>
    %c0_46 = arith.constant 0 : index
    %c0_47 = arith.constant 0 : index
    %67 = vector.load %arg3[%c0_46, %c0_47] : memref<32x32xf32, #tpu.memory_space<vmem>>, vector<32x32xf32>
    %cst_48 = arith.constant dense<0.000000e+00> : vector<64x32xf32>
    %68 = tpu.matmul %66, %67, %cst_48 {dimension_numbers = #tpu.dot_dimension_numbers<[1], [0], [0], [1], [0, 0, 1, 1], [], []>} : vector<64x32xf32>, vector<32x32xf32>, vector<64x32xf32> -> vector<64x32xf32>
    %69 = arith.subf %66, %68 : vector<64x32xf32>
    %70 = arith.mulf %69, %69 : vector<64x32xf32>
    %c0_49 = arith.constant 0 : index
    %c0_50 = arith.constant 0 : index
    %71 = vector.load %arg3[%c0_49, %c0_50] : memref<32x32xf32, #tpu.memory_space<vmem>>, vector<32x32xf32>
    %cst_51 = arith.constant dense<0.000000e+00> : vector<64x32xf32>
    %72 = tpu.matmul %70, %71, %cst_51 {dimension_numbers = #tpu.dot_dimension_numbers<[1], [0], [0], [1], [0, 0, 1, 1], [], []>} : vector<64x32xf32>, vector<32x32xf32>, vector<64x32xf32> -> vector<64x32xf32>
    %cst_52 = arith.constant 9.99999974E-6 : f32
    %73 = vector.broadcast %cst_52 : f32 to vector<64x32xf32>
    %74 = arith.addf %72, %73 : vector<64x32xf32>
    %75 = math.rsqrt %74 : vector<64x32xf32>
    %76 = arith.mulf %69, %75 : vector<64x32xf32>
    %c0_53 = arith.constant 0 : index
    %c0_54 = arith.constant 0 : index
    %77 = vector.load %arg4[%c0_53, %c0_54] : memref<1x32xf32, #tpu.memory_space<vmem>>, vector<1x32xf32>
    %78 = vector.broadcast %77 : vector<1x32xf32> to vector<64x32xf32>
    %79 = arith.mulf %76, %78 : vector<64x32xf32>
    %c0_55 = arith.constant 0 : index
    %c0_56 = arith.constant 0 : index
    %80 = vector.load %arg5[%c0_55, %c0_56] : memref<1x32xf32, #tpu.memory_space<vmem>>, vector<1x32xf32>
    %81 = vector.broadcast %80 : vector<1x32xf32> to vector<64x32xf32>
    %82 = arith.addf %79, %81 : vector<64x32xf32>
    %83 = vector.shape_cast %82 : vector<64x32xf32> to vector<8x8x32xf32>
    %c0_57 = arith.constant 0 : index
    %c3 = arith.constant 3 : index
    %c0_58 = arith.constant 0 : index
    %c0_59 = arith.constant 0 : index
    %84 = vector.load %arg6[%c0_57, %c3, %c0_58, %c0_59] : memref<8x4x8x32xf32, #tpu.memory_space<vmem>>, vector<8x1x8x32xf32>
    %85 = vector.shape_cast %84 : vector<8x1x8x32xf32> to vector<8x8x32xf32>
    %86 = vector.shape_cast %83 : vector<8x8x32xf32> to vector<8x1x8x32xf32>
    tpu.vector_store %arg6[%c0_57, %c3, %c0_58, %c0_59], %86 {strides = array<i32>} : memref<8x4x8x32xf32, #tpu.memory_space<vmem>>, vector<8x1x8x32xf32>,
    return
  }
  func.func @transform_0(%arg0: i32) -> (i32, i32) {
    %c0_i32 = arith.constant 0 : i32
    %c0_i32_0 = arith.constant 0 : i32
    return %arg0, %c0_i32 : i32, i32
  }
  func.func @transform_1(%arg0: i32) -> (i32, i32) {
    %c0_i32 = arith.constant 0 : i32
    %c0_i32_0 = arith.constant 0 : i32
    %c0_i32_1 = arith.constant 0 : i32
    return %c0_i32, %c0_i32_0 : i32, i32
  }
  func.func @transform_2(%arg0: i32) -> (i32, i32) {
    %c0_i32 = arith.constant 0 : i32
    %c0_i32_0 = arith.constant 0 : i32
    %c0_i32_1 = arith.constant 0 : i32
    return %c0_i32, %c0_i32_0 : i32, i32
  }
  func.func @transform_3(%arg0: i32) -> (i32, i32) {
    %c0_i32 = arith.constant 0 : i32
    %c0_i32_0 = arith.constant 0 : i32
    %c0_i32_1 = arith.constant 0 : i32
    return %c0_i32, %c0_i32_0 : i32, i32
  }
  func.func @transform_4(%arg0: i32) -> (i32, i32) {
    %c0_i32 = arith.constant 0 : i32
    %c0_i32_0 = arith.constant 0 : i32
    %c0_i32_1 = arith.constant 0 : i32
    return %c0_i32, %c0_i32_0 : i32, i32
  }
  func.func @transform_5(%arg0: i32) -> (i32, i32, i32, i32) {
    %c0_i32 = arith.constant 0 : i32
    %c0_i32_0 = arith.constant 0 : i32
    %c0_i32_1 = arith.constant 0 : i32
    %c0_i32_2 = arith.constant 0 : i32
    return %arg0, %c0_i32, %c0_i32_0, %c0_i32_1 : i32, i32, i32, i32
  }
}

</mosaic_0001>

<llo_original>
// kernel: tile.18
$region0: #{tile.18}
  #allocation2 [shape = 's32[1]{0}', space=sflag, size = 0x4, scoped, tag = 'scoped memory for tile.18']
  %s0 = inlined_call_operand.hbm [shape: f32[8], index: 0, kind: input, shape index: {}]
  %s1 = inlined_call_operand.vmem [shape: f32[4,8], index: 1, kind: output, shape index: {}]
  $region1: #{tile.18} parent=0
    #allocation0 [shape = 'u8[512]{0}', space=vmem, size = 0x400, scoped, tag = 'operand span for operand 0']
    #allocation1 [shape = 's32[1]{0}', space=sflag, size = 0x4, scoped, tag = 'scoped memory for tile.18']
    %2 = vsyncpa [#allocation1], 0
    // Predicated region
    $region2: #{tile.18} parent=1 // pred_check
      _
    $region3: #{tile.18} parent=1 // pred_check_branch
      %4 = sbr.rel (0) target = $region5
    $region4: #{tile.18} parent=1 // pred_region
      %s6 = ssub.s32 16, 16
      %7 = vsyncadd [#allocation1], %s6
      %s9 = sshll.u32 [#allocation0], 4
      %s10 = int_to_ptr.vmem [resolvable:$true] %s9
      %12 = dma.hbm_to_vmem [thread:$0]  %s0, 16, %s10, [#allocation1]
    $region5: #{tile.18} parent=1 // pred_fallthru
      _
    // Predicated region
    $region6: #{tile.18} parent=1 // pred_check
      _
    $region7: #{tile.18} parent=1 // pred_check_branch
      %14 = sbr.rel (0) target = $region9
    $region8: #{tile.18} parent=1 // pred_region
      %15 = dma.done [#allocation1], 16
    $region9: #{tile.18} parent=1 // pred_fallthru
      _
    %v16 = vld [vmem:[#allocation0] ss:$0 sm:$0xff]
    %17 = vst [vmem:[%s1] sm:$0xf] %v16
    %18 = vsyncpa [#allocation1], 1

// kernel: tile.19
$region0: #{tile.19}
  %s0 = inlined_call_operand.vmem [shape: f32[4,8], index: 0, kind: input, shape index: {}]
  %s1 = inlined_call_operand.vmem [shape: f32[1,32], index: 1, kind: output, shape index: {}]
  $region1: #{tile.19} parent=0
    #allocation0 [shape = 'u8[4096]{0}', space=vmem, size = 0x1000, scoped, tag = 'scoped mem for output reshape']
    #allocation1 [shape = 'u8[4096]{0}', space=vmem, size = 0x1000, scoped, tag = 'scoped mem for input reshape']
    %s3 = sshllo.u32 0, 4
    %v4 = vld [vmem:[%s0] sm:%s3]
    %5 = vst [vmem:[#allocation1] sm:%s3] %v4
    %v6 = vld [vmem:[#allocation1] sm:$0x1]
    %vm7 = vcmask 64512
    %8 = vst.msk [vmem:[#allocation0] sm:$0x1] %vm7, %v6
    %s9 = scalar_lea.vmem [#allocation1], 3
    %v10 = vld [vmem:[%s9] sm:$0x1]
    %11 = vrot.lane.b32.xlu0 %v10, 24
    %v12 = vpop.permute.xlu0 %11
    %vm13 = vcmask 261312
    %14 = vst.msk [vmem:[#allocation0] sm:$0x1] %vm13, %v12
    %s15 = scalar_lea.vmem [#allocation1], 2
    %v16 = vld [vmem:[%s15] sm:$0x1]
    %17 = vrot.lane.b32.xlu0 %v16, 16
    %v18 = vpop.permute.xlu0 %17
    %vm19 = vcmask 195712
    %20 = vst.msk [vmem:[#allocation0] sm:$0x1] %vm19, %v18
    %s21 = scalar_lea.vmem [#allocation1], 1
    %v22 = vld [vmem:[%s21] sm:$0x1]
    %23 = vrot.lane.b32.xlu0 %v22, 8
    %v24 = vpop.permute.xlu0 %23
    %vm25 = vcmask 130112
    %26 = vst.msk [vmem:[#allocation0] sm:$0x1] %vm25, %v24
    %s28 = sshllo.u32 0, 1
    %v30 = vld [vmem:[#allocation0] sm:%s28]
    %s31 = sshllo.u32 0, 1
    %32 = vst [vmem:[%s1] sm:%s31] %v30

// kernel: final_patch_expand2d_forward.1
$region0: #{final_patch_expand2d_forward.1}
  #allocation0 [shape = 'u32[]', space=smem, size = 0x4, offset = 0x4, fixed_abs, tag = 'smem constant byte address 0x4 - core index']
  #allocation1 [shape = 'u32[144,128]{1,0:T(1,128)}', space=vmem, size = 0x12000, scoped, tag = 'internal scratch']
  %s0 = inlined_call_operand.hbm [shape: f32[128,32], index: 0, kind: input, shape index: {}]
  %s1 = inlined_call_operand.vmem [shape: f32[32,128], index: 1, kind: input, shape index: {}]
  %s2 = inlined_call_operand.vmem [shape: f32[32,32], index: 2, kind: input, shape index: {}]
  %s3 = inlined_call_operand.vmem [shape: f32[1,32], index: 3, kind: input, shape index: {}]
  %s4 = inlined_call_operand.vmem [shape: f32[1,32], index: 4, kind: input, shape index: {}]
  %s5 = inlined_call_operand.vmem [shape: f32[16,4,8,32], index: 5, kind: output, shape index: {}]
  %s6 = sld [smem:[#allocation0]]
  $region57: #{final_patch_expand2d_forward.1} parent=0
    _
  %s8 = ssub.s32 1, %s6
  %s9 = scalar_select 0, %s8, %s6
  $region1: #{final_patch_expand2d_forward.1} parent=0
    #allocation2 [shape = 'u8[65536]{0}', space=vmem, size = 0x10000, scoped, tag = 'input window, operand 0']
    #allocation3 [shape = 's32[2]{0}', space=sflag, size = 0x8, scoped, tag = 'scoped memory for final_patch_expand2d_forward.1']
    %10 = vsyncpa [#allocation3], 0
    %s11 = scalar_lea.sflag [#allocation3], 1
    %12 = vsyncpa %s11, 0
    loop: start=0, step=1, limit=4
    $region2: #{final_patch_expand2d_forward.1} parent=1 // loop_pre_header
      _
    $region3: #{final_patch_expand2d_forward.1} parent=1 // loop_header
      %s14 = sphi 0, %s18
      %p15 = scmp.ge.s32.totalorder %s14, 4
      %s24 = sphi 0, %s26
      %s27 = sphi 0, %s24
      %s28 = sphi 0, %s27
      %s44 = sphi 0, %s28
      %s48 = sphi 0, %s48
      %s50 = sphi 0, %s48
      %s51 = sphi 0, %s50
      %s65 = sphi 0, %s51
      %s69 = sphi 0, %s69
      %s71 = sphi 0, %s69
      %s72 = sphi 0, %s71
      %s86 = sphi 0, %s72
      %s90 = sphi 0, %s90
      %s92 = sphi 0, %s90
      %s93 = sphi 0, %s92
      %s107 = sphi 0, %s93
      %s111 = sphi 0, %s111
      %s113 = sphi 0, %s111
      %s114 = sphi 0, %s113
      %s128 = sphi 0, %s114
      %s134 = sphi 0, %s136
      %s137 = sphi 0, %s134
      %s138 = sphi 0, %s137
      %s154 = sphi 0, %s138
    $region4: #{final_patch_expand2d_forward.1} parent=1 // loop_header_branch
      %17 = sbr.rel (%p15) target = $region8
    $region5: #{final_patch_expand2d_forward.1} parent=1 // loop_body
      %s19 = ssub.s32 %s14, 1
      %s20 = ssub.s32 %s14, 2
      %s21 = sadd.s32 %s14, 1
      %s22 = ssub.s32 %s14, %s21
      %p23 = scmp.eq.s32.totalorder %s22, 0
      %s25 = sadd.s32 %s24, 1
      %s26 = scalar_select %p23, %s24, %s25
      %p29 = pneg %p23
      %p30 = scmp.eq.s32.totalorder %s14, 1
      %p31 = por %p29, %p30
      %p32 = scmp.ne.s32.totalorder %s24, %s27
      %p33 = scmp.eq.s32.totalorder %s14, 0
      %p34 = por %p32, %p33
      %p35 = scmp.ne.s32.totalorder %s24, %s27
      %p36 = scmp.eq.s32.totalorder %s19, 1
      %p37 = por %p35, %p36
      %p38 = scmp.ne.s32.totalorder %s27, %s28
      %p39 = scmp.eq.s32.totalorder %s19, 0
      %p40 = por %p38, %p39
      %p41 = scmp.ne.s32.totalorder %s27, %s28
      %p42 = scmp.eq.s32.totalorder %s20, 1
      %p43 = por %p41, %p42
      %p45 = scmp.ne.s32.totalorder %s28, %s44
      %p46 = scmp.eq.s32.totalorder %s20, 0
      %p47 = por %p45, %p46
      %s49 = sadd.s32 %s48, 1
      %p52 = scmp.eq.s32.totalorder %s14, 1
      %p53 = scmp.ne.s32.totalorder %s48, %s50
      %p54 = scmp.eq.s32.totalorder %s14, 0
      %p55 = por %p53, %p54
      %p56 = scmp.ne.s32.totalorder %s48, %s50
      %p57 = scmp.eq.s32.totalorder %s19, 1
      %p58 = por %p56, %p57
      %p59 = scmp.ne.s32.totalorder %s50, %s51
      %p60 = scmp.eq.s32.totalorder %s19, 0
      %p61 = por %p59, %p60
      %p62 = scmp.ne.s32.totalorder %s50, %s51
      %p63 = scmp.eq.s32.totalorder %s20, 1
      %p64 = por %p62, %p63
      %p66 = scmp.ne.s32.totalorder %s51, %s65
      %p67 = scmp.eq.s32.totalorder %s20, 0
      %p68 = por %p66, %p67
      %s70 = sadd.s32 %s69, 1
      %p73 = scmp.eq.s32.totalorder %s14, 1
      %p74 = scmp.ne.s32.totalorder %s69, %s71
      %p75 = scmp.eq.s32.totalorder %s14, 0
      %p76 = por %p74, %p75
      %p77 = scmp.ne.s32.totalorder %s69, %s71
      %p78 = scmp.eq.s32.totalorder %s19, 1
      %p79 = por %p77, %p78
      %p80 = scmp.ne.s32.totalorder %s71, %s72
      %p81 = scmp.eq.s32.totalorder %s19, 0
      %p82 = por %p80, %p81
      %p83 = scmp.ne.s32.totalorder %s71, %s72
      %p84 = scmp.eq.s32.totalorder %s20, 1
      %p85 = por %p83, %p84
      %p87 = scmp.ne.s32.totalorder %s72, %s86
      %p88 = scmp.eq.s32.totalorder %s20, 0
      %p89 = por %p87, %p88
      %s91 = sadd.s32 %s90, 1
      %p94 = scmp.eq.s32.totalorder %s14, 1
      %p95 = scmp.ne.s32.totalorder %s90, %s92
      %p96 = scmp.eq.s32.totalorder %s14, 0
      %p97 = por %p95, %p96
      %p98 = scmp.ne.s32.totalorder %s90, %s92
      %p99 = scmp.eq.s32.totalorder %s19, 1
      %p100 = por %p98, %p99
      %p101 = scmp.ne.s32.totalorder %s92, %s93
      %p102 = scmp.eq.s32.totalorder %s19, 0
      %p103 = por %p101, %p102
      %p104 = scmp.ne.s32.totalorder %s92, %s93
      %p105 = scmp.eq.s32.totalorder %s20, 1
      %p106 = por %p104, %p105
      %p108 = scmp.ne.s32.totalorder %s93, %s107
      %p109 = scmp.eq.s32.totalorder %s20, 0
      %p110 = por %p108, %p109
      %s112 = sadd.s32 %s111, 1
      %p115 = scmp.eq.s32.totalorder %s14, 1
      %p116 = scmp.ne.s32.totalorder %s111, %s113
      %p117 = scmp.eq.s32.totalorder %s14, 0
      %p118 = por %p116, %p117
      %p119 = scmp.ne.s32.totalorder %s111, %s113
      %p120 = scmp.eq.s32.totalorder %s19, 1
      %p121 = por %p119, %p120
      %p122 = scmp.ne.s32.totalorder %s113, %s114
      %p123 = scmp.eq.s32.totalorder %s19, 0
      %p124 = por %p122, %p123
      %p125 = scmp.ne.s32.totalorder %s113, %s114
      %p126 = scmp.eq.s32.totalorder %s20, 1
      %p127 = por %p125, %p126
      %p129 = scmp.ne.s32.totalorder %s114, %s128
      %p130 = scmp.eq.s32.totalorder %s20, 0
      %p131 = por %p129, %p130
      %s132 = ssub.s32 %s14, %s21
      %p133 = scmp.eq.s32.totalorder %s132, 0
      %s135 = sadd.s32 %s134, 1
      %s136 = scalar_select %p133, %s134, %s135
      %p139 = pneg %p133
      %p140 = scmp.eq.s32.totalorder %s14, 1
      %p141 = por %p139, %p140
      %p142 = scmp.ne.s32.totalorder %s134, %s137
      %p143 = scmp.eq.s32.totalorder %s14, 0
      %p144 = por %p142, %p143
      %p145 = scmp.ne.s32.totalorder %s134, %s137
      %p146 = scmp.eq.s32.totalorder %s19, 1
      %p147 = por %p145, %p146
      %p148 = scmp.ne.s32.totalorder %s137, %s138
      %p149 = scmp.eq.s32.totalorder %s19, 0
      %p150 = por %p148, %p149
      %p151 = scmp.ne.s32.totalorder %s137, %s138
      %p152 = scmp.eq.s32.totalorder %s20, 1
      %p153 = por %p151, %p152
      %p155 = scmp.ne.s32.totalorder %s138, %s154
      %p156 = scmp.eq.s32.totalorder %s20, 0
      %p157 = por %p155, %p156
      %p158 = scmp.le.s32.totalorder 1, %s14
      %p159 = scmp.lt.s32.totalorder %s14, 3
      %p160 = pnand %p158, %p159
      %p161 = pneg %p160
      // Predicated region
      $region9: #{final_patch_expand2d_forward.1} parent=5 // pred_check
        _
      $region10: #{final_patch_expand2d_forward.1} parent=5 // pred_check_branch
        %163 = sbr.rel (%p160) target = $region12
      $region11: #{final_patch_expand2d_forward.1} parent=5 // pred_region
        %s164 = ssub.s32 %s14, 1
        // Predicated region
        $region13: #{final_patch_expand2d_forward.1} parent=11 // pred_check
          %p165 = pneg %p61
        $region14: #{final_patch_expand2d_forward.1} parent=11 // pred_check_branch
          %167 = sbr.rel (%p165) target = $region16
        $region15: #{final_patch_expand2d_forward.1} parent=11 // pred_region
          _
        $region16: #{final_patch_expand2d_forward.1} parent=11 // pred_fallthru
          _
        // Predicated region
        $region17: #{final_patch_expand2d_forward.1} parent=11 // pred_check
          %p168 = pneg %p82
        $region18: #{final_patch_expand2d_forward.1} parent=11 // pred_check_branch
          %170 = sbr.rel (%p168) target = $region20
        $region19: #{final_patch_expand2d_forward.1} parent=11 // pred_region
          _
        $region20: #{final_patch_expand2d_forward.1} parent=11 // pred_fallthru
          _
        // Predicated region
        $region21: #{final_patch_expand2d_forward.1} parent=11 // pred_check
          %p171 = pneg %p103
        $region22: #{final_patch_expand2d_forward.1} parent=11 // pred_check_branch
          %173 = sbr.rel (%p171) target = $region24
        $region23: #{final_patch_expand2d_forward.1} parent=11 // pred_region
          _
        $region24: #{final_patch_expand2d_forward.1} parent=11 // pred_fallthru
          _
        // Predicated region
        $region25: #{final_patch_expand2d_forward.1} parent=11 // pred_check
          %p174 = pneg %p124
        $region26: #{final_patch_expand2d_forward.1} parent=11 // pred_check_branch
          %176 = sbr.rel (%p174) target = $region28
        $region27: #{final_patch_expand2d_forward.1} parent=11 // pred_region
          _
        $region28: #{final_patch_expand2d_forward.1} parent=11 // pred_fallthru
          _
      $region12: #{final_patch_expand2d_forward.1} parent=5 // pred_fallthru
        _
      %p177 = scmp.lt.s32.totalorder %s14, 2
      // Predicated region
      $region29: #{final_patch_expand2d_forward.1} parent=5 // pred_check
        %p178 = pneg %p177
      $region30: #{final_patch_expand2d_forward.1} parent=5 // pred_check_branch
        %180 = sbr.rel (%p178) target = $region32
      $region31: #{final_patch_expand2d_forward.1} parent=5 // pred_region
        // Predicated region
        $region33: #{final_patch_expand2d_forward.1} parent=31 // pred_check
          %p181 = pneg %p34
        $region34: #{final_patch_expand2d_forward.1} parent=31 // pred_check_branch
          %183 = sbr.rel (%p181) target = $region36
        $region35: #{final_patch_expand2d_forward.1} parent=31 // pred_region
          %s184 = sand.u32 %s24, 1
          %s185 = scalar_lea.sflag [#allocation3], %s184
          %s186 = sand.u32 %s24, 1
          %s187 = smul.addr %s186, 64
          %s188 = scalar_lea.vmem [#allocation2], %s187
          %s189 = smul.u32 8, %s14
          %s191 = ssub.s32 1024, 1024
          %192 = vsyncadd %s185, %s191
          %s193 = smul.addr %s189, 128
          %s194 = scalar_lea.hbm %s0, %s193
          %s195 = sshll.u32 %s188, 4
          %s196 = int_to_ptr.vmem [resolvable:$true] %s195
          %201 = dma.hbm_to_vmem [thread:$0]  %s194, 1024, %s196, %s185, 128, 128, 8
        $region36: #{final_patch_expand2d_forward.1} parent=31 // pred_fallthru
          _
      $region32: #{final_patch_expand2d_forward.1} parent=5 // pred_fallthru
        _
      %p202 = scmp.le.s32.totalorder 1, %s14
      %p203 = scmp.lt.s32.totalorder %s14, 3
      %p204 = pnand %p202, %p203
      %p205 = pneg %p204
      // Predicated region
      $region37: #{final_patch_expand2d_forward.1} parent=5 // pred_check
        _
      $region38: #{final_patch_expand2d_forward.1} parent=5 // pred_check_branch
        %207 = sbr.rel (%p204) target = $region40
      $region39: #{final_patch_expand2d_forward.1} parent=5 // pred_region
        %s208 = ssub.s32 %s14, 1
        %s209 = sand.u32 %s27, 1
        %s210 = scalar_lea.sflag [#allocation3], %s209
        %s211 = sand.u32 %s27, 1
        %s212 = smul.addr %s211, 64
        %s213 = scalar_lea.vmem [#allocation2], %s212
        // Predicated region
        $region41: #{final_patch_expand2d_forward.1} parent=39 // pred_check
          %p214 = pneg %p40
        $region42: #{final_patch_expand2d_forward.1} parent=39 // pred_check_branch
          %216 = sbr.rel (%p214) target = $region44
        $region43: #{final_patch_expand2d_forward.1} parent=39 // pred_region
          %217 = dma.done %s210, 1024
        $region44: #{final_patch_expand2d_forward.1} parent=39 // pred_fallthru
          _
        %s218 = sand.u32 %s27, 1
        %s219 = scalar_lea.sflag [#allocation3], %s218
        %s220 = sand.u32 %s27, 1
        %s221 = smul.addr %s220, 64
        %s222 = scalar_lea.vmem [#allocation2], %s221
        %p223 = pneg %p40
        %p224 = pneg %p37
        %p225 = pneg %p61
        %p226 = pneg %p58
        %p227 = pneg %p82
        %p228 = pneg %p79
        %p229 = pneg %p103
        %p230 = pneg %p100
        %p231 = pneg %p124
        %p232 = pneg %p121
        %p233 = pneg %p150
        %p234 = pneg %p147
        %s235 = smul.u32 8, %s19
        %p236 = scmp.lt.s32.totalorder %s235, 15
        %s237 = scalar_select %p236, %s235, 15
        %s238 = smul.addr %s237, 4
        %s239 = smul.addr %s238, 8
        %s240 = scalar_lea.vmem %s5, %s239
        %s241 = smul.u32 8, %s19
        %s242 = smul.u32 8, %s19
        %p243 = scmp.lt.s32.totalorder %s242, 15
        %s244 = scalar_select %p243, %s242, 15
        %s245 = smul.addr %s244, 4
        %s246 = smul.addr %s245, 8
        %s247 = scalar_lea.vmem %s5, %s246
        %s248 = smul.u32 8, %s19
        %v249 = vld [vmem:[%s213] sm:$0xff]
        %v250 = vld [vmem:[%s213 + $0x8] sm:$0xff]
        %v251 = vld [vmem:[%s213 + $0x10] sm:$0xff]
        %v252 = vld [vmem:[%s213 + $0x18] sm:$0xff]
        %v253 = vld [vmem:[%s213 + $0x20] sm:$0xff]
        %v254 = vld [vmem:[%s213 + $0x28] sm:$0xff]
        %v255 = vld [vmem:[%s213 + $0x30] sm:$0xff]
        %v256 = vld [vmem:[%s213 + $0x38] sm:$0xff]
        %v257 = vld [vmem:[%s1] sm:$0xff]
        %v258 = vld [vmem:[%s1 + $0x8] sm:$0xff]
        %v259 = vld [vmem:[%s1 + $0x10] sm:$0xff]
        %v260 = vld [vmem:[%s1 + $0x18] sm:$0xff]
        %vm261 = vcmask 261120
        %v263 = vsel %vm261, %v249, 0
        %v266 = vsel %vm261, %v250, 0
        %v269 = vsel %vm261, %v251, 0
        %v272 = vsel %vm261, %v252, 0
        %v275 = vsel %vm261, %v253, 0
        %v278 = vsel %vm261, %v254, 0
        %v281 = vsel %vm261, %v255, 0
        %v284 = vsel %vm261, %v256, 0
        %286 = vmatprep.subr.mxu0 0.0
        %287 = vmatpush1.msra.mxu0 %v257
        %288 = vmatprep.subr.mxu0 0.0
        %289 = vmatpush1.msra.mxu0 %v258
        %290 = vmatprep.subr.mxu0 0.0
        %291 = vmatpush1.msra.mxu0 %v259
        %292 = vmatprep.subr.mxu0 0.0
        %293 = vmatpush1.msra.mxu0 %v260
        %294 = vmatprep.subr.mxu0 0.0
        %295 = vmatpush1.msra.mxu0 0.0
        %296 = vmatprep.subr.mxu0 0.0
        %297 = vmatpush1.msra.mxu0 0.0
        %298 = vmatprep.subr.mxu0 0.0
        %299 = vmatpush1.msra.mxu0 0.0
        %300 = vmatprep.subr.mxu0 0.0
        %301 = vmatpush1.msra.mxu0 0.0
        %302 = vmatprep.subr.mxu0 0.0
        %303 = vmatpush1.msra.mxu0 0.0
        %304 = vmatprep.subr.mxu0 0.0
        %305 = vmatpush1.msra.mxu0 0.0
        %306 = vmatprep.subr.mxu0 0.0
        %307 = vmatpush1.msra.mxu0 0.0
        %308 = vmatprep.subr.mxu0 0.0
        %309 = vmatpush1.msra.mxu0 0.0
        %310 = vmatprep.subr.mxu0 0.0
        %311 = vmatpush1.msra.mxu0 0.0
        %312 = vmatprep.subr.mxu0 0.0
        %313 = vmatpush1.msra.mxu0 0.0
        %314 = vmatprep.subr.mxu0 0.0
        %315 = vmatpush1.msra.mxu0 0.0
        %316 = vmatprep.subr.mxu0 0.0
        %317 = vmatpush1.msra.mxu0 0.0
        %318 = vmatprep.subr.mxu0 0.0
        %319 = vmatpush1.msra.mxu0 0.0
        %320 = vmatprep.subr.mxu0 0.0
        %321 = vmatpush1.msra.mxu0 0.0
        %322 = vmatprep.subr.mxu0 0.0
        %323 = vmatpush1.msra.mxu0 0.0
        %324 = vmatprep.subr.mxu0 0.0
        %325 = vmatpush1.msra.mxu0 0.0
        %326 = vmatprep.subr.mxu0 0.0
        %327 = vmatpush1.msra.mxu0 0.0
        %328 = vmatprep.subr.mxu0 0.0
        %329 = vmatpush1.msra.mxu0 0.0
        %330 = vmatprep.subr.mxu0 0.0
        %331 = vmatpush1.msra.mxu0 0.0
        %332 = vmatprep.subr.mxu0 0.0
        %333 = vmatpush1.msra.mxu0 0.0
        %334 = vmatprep.subr.mxu0 0.0
        %335 = vmatpush1.msra.mxu0 0.0
        %336 = vmatprep.subr.mxu0 0.0
        %337 = vmatpush1.msra.mxu0 0.0
        %338 = vmatprep.subr.mxu0 0.0
        %339 = vmatpush1.msra.mxu0 0.0
        %340 = vmatprep.subr.mxu0 0.0
        %341 = vmatpush1.msra.mxu0 0.0
        %342 = vmatprep.subr.mxu0 0.0
        %343 = vmatpush1.msra.mxu0 0.0
        %344 = vmatprep.subr.mxu0 0.0
        %345 = vmatpush1.msra.mxu0 0.0
        %346 = vmatprep.subr.mxu0 0.0
        %347 = vmatpush1.msra.mxu0 0.0
        %348 = vmatprep.subr.mxu0 0.0
        %349 = vmatpush1.msra.mxu0 0.0
        %350 = vmatprep.mubr.f32.mxu0 0.0
        %351 = vmatmul.mubr.f32.gmra.mrb[0].mxu0 %v263
        %v352 = vpop.f32.mrb[0].mxu0
        %v353 = vadd.f32 0.0, %v352
        %v354 = vpop.f32.mrb[0].mxu0
        %355 = vmatprep.mubr.f32.mxu0 0.0
        %356 = vmatmul.mubr.f32.gmra.mrb[0].mxu0 %v266
        %v357 = vpop.f32.mrb[0].mxu0
        %v358 = vadd.f32 0.0, %v357
        %v359 = vpop.f32.mrb[0].mxu0
        %360 = vmatprep.mubr.f32.mxu0 0.0
        %361 = vmatmul.mubr.f32.gmra.mrb[0].mxu0 %v269
        %v362 = vpop.f32.mrb[0].mxu0
        %v363 = vadd.f32 0.0, %v362
        %v364 = vpop.f32.mrb[0].mxu0
        %365 = vmatprep.mubr.f32.mxu0 0.0
        %366 = vmatmul.mubr.f32.gmra.mrb[0].mxu0 %v272
        %v367 = vpop.f32.mrb[0].mxu0
        %v368 = vadd.f32 0.0, %v367
        %v369 = vpop.f32.mrb[0].mxu0
        %370 = vmatprep.mubr.f32.mxu0 0.0
        %371 = vmatmul.mubr.f32.gmra.mrb[0].mxu0 %v275
        %v372 = vpop.f32.mrb[0].mxu0
        %v373 = vadd.f32 0.0, %v372
        %v374 = vpop.f32.mrb[0].mxu0
        %375 = vmatprep.mubr.f32.mxu0 0.0
        %376 = vmatmul.mubr.f32.gmra.mrb[0].mxu0 %v278
        %v377 = vpop.f32.mrb[0].mxu0
        %v378 = vadd.f32 0.0, %v377
        %v379 = vpop.f32.mrb[0].mxu0
        %380 = vmatprep.mubr.f32.mxu0 0.0
        %381 = vmatmul.mubr.f32.gmra.mrb[0].mxu0 %v281
        %v382 = vpop.f32.mrb[0].mxu0
        %v383 = vadd.f32 0.0, %v382
        %v384 = vpop.f32.mrb[0].mxu0
        %385 = vmatprep.mubr.f32.mxu0 0.0
        %386 = vmatmul.mubr.f32.gmra.mrb[0].mxu0 %v284
        %v387 = vpop.f32.mrb[0].mxu0
        %v388 = vadd.f32 0.0, %v387
        %v389 = vpop.f32.mrb[0].mxu0
        %390 = vdwg.mxu0
        %v391 = vld [vmem:[%s2] sm:$0xff]
        %v392 = vld [vmem:[%s2 + $0x8] sm:$0xff]
        %v393 = vld [vmem:[%s2 + $0x10] sm:$0xff]
        %v394 = vld [vmem:[%s2 + $0x18] sm:$0xff]
        %v396 = vsel %vm261, %v353, 0
        %v399 = vsel %vm261, %v358, 0
        %v402 = vsel %vm261, %v363, 0
        %v405 = vsel %vm261, %v368, 0
        %v408 = vsel %vm261, %v373, 0
        %v411 = vsel %vm261, %v378, 0
        %v414 = vsel %vm261, %v383, 0
        %v417 = vsel %vm261, %v388, 0
        %419 = vmatprep.subr.mxu0 0.0
        %420 = vmatpush1.msra.mxu0 %v391
        %421 = vmatprep.subr.mxu0 0.0
        %422 = vmatpush1.msra.mxu0 %v392
        %423 = vmatprep.subr.mxu0 0.0
        %424 = vmatpush1.msra.mxu0 %v393
        %425 = vmatprep.subr.mxu0 0.0
        %426 = vmatpush1.msra.mxu0 %v394
        %427 = vmatprep.subr.mxu0 0.0
        %428 = vmatpush1.msra.mxu0 0.0
        %429 = vmatprep.subr.mxu0 0.0
        %430 = vmatpush1.msra.mxu0 0.0
        %431 = vmatprep.subr.mxu0 0.0
        %432 = vmatpush1.msra.mxu0 0.0
        %433 = vmatprep.subr.mxu0 0.0
        %434 = vmatpush1.msra.mxu0 0.0
        %435 = vmatprep.subr.mxu0 0.0
        %436 = vmatpush1.msra.mxu0 0.0
        %437 = vmatprep.subr.mxu0 0.0
        %438 = vmatpush1.msra.mxu0 0.0
        %439 = vmatprep.subr.mxu0 0.0
        %440 = vmatpush1.msra.mxu0 0.0
        %441 = vmatprep.subr.mxu0 0.0
        %442 = vmatpush1.msra.mxu0 0.0
        %443 = vmatprep.subr.mxu0 0.0
        %444 = vmatpush1.msra.mxu0 0.0
        %445 = vmatprep.subr.mxu0 0.0
        %446 = vmatpush1.msra.mxu0 0.0
        %447 = vmatprep.subr.mxu0 0.0
        %448 = vmatpush1.msra.mxu0 0.0
        %449 = vmatprep.subr.mxu0 0.0
        %450 = vmatpush1.msra.mxu0 0.0
        %451 = vmatprep.subr.mxu0 0.0
        %452 = vmatpush1.msra.mxu0 0.0
        %453 = vmatprep.subr.mxu0 0.0
        %454 = vmatpush1.msra.mxu0 0.0
        %455 = vmatprep.subr.mxu0 0.0
        %456 = vmatpush1.msra.mxu0 0.0
        %457 = vmatprep.subr.mxu0 0.0
        %458 = vmatpush1.msra.mxu0 0.0
        %459 = vmatprep.subr.mxu0 0.0
        %460 = vmatpush1.msra.mxu0 0.0
        %461 = vmatprep.subr.mxu0 0.0
        %462 = vmatpush1.msra.mxu0 0.0
        %463 = vmatprep.subr.mxu0 0.0
        %464 = vmatpush1.msra.mxu0 0.0
        %465 = vmatprep.subr.mxu0 0.0
        %466 = vmatpush1.msra.mxu0 0.0
        %467 = vmatprep.subr.mxu0 0.0
        %468 = vmatpush1.msra.mxu0 0.0
        %469 = vmatprep.subr.mxu0 0.0
        %470 = vmatpush1.msra.mxu0 0.0
        %471 = vmatprep.subr.mxu0 0.0
        %472 = vmatpush1.msra.mxu0 0.0
        %473 = vmatprep.subr.mxu0 0.0
        %474 = vmatpush1.msra.mxu0 0.0
        %475 = vmatprep.subr.mxu0 0.0
        %476 = vmatpush1.msra.mxu0 0.0
        %477 = vmatprep.subr.mxu0 0.0
        %478 = vmatpush1.msra.mxu0 0.0
        %479 = vmatprep.subr.mxu0 0.0
        %480 = vmatpush1.msra.mxu0 0.0
        %481 = vmatprep.subr.mxu0 0.0
        %482 = vmatpush1.msra.mxu0 0.0
        %483 = vmatprep.mubr.f32.mxu0 0.0
        %484 = vmatmul.mubr.f32.gmra.mrb[0].mxu0 %v396
        %v485 = vpop.f32.mrb[0].mxu0
        %v486 = vadd.f32 0.0, %v485
        %v487 = vpop.f32.mrb[0].mxu0
        %488 = vmatprep.mubr.f32.mxu0 0.0
        %489 = vmatmul.mubr.f32.gmra.mrb[0].mxu0 %v399
        %v490 = vpop.f32.mrb[0].mxu0
        %v491 = vadd.f32 0.0, %v490
        %v492 = vpop.f32.mrb[0].mxu0
        %493 = vmatprep.mubr.f32.mxu0 0.0
        %494 = vmatmul.mubr.f32.gmra.mrb[0].mxu0 %v402
        %v495 = vpop.f32.mrb[0].mxu0
        %v496 = vadd.f32 0.0, %v495
        %v497 = vpop.f32.mrb[0].mxu0
        %498 = vmatprep.mubr.f32.mxu0 0.0
        %499 = vmatmul.mubr.f32.gmra.mrb[0].mxu0 %v405
        %v500 = vpop.f32.mrb[0].mxu0
        %v501 = vadd.f32 0.0, %v500
        %v502 = vpop.f32.mrb[0].mxu0
        %503 = vmatprep.mubr.f32.mxu0 0.0
        %504 = vmatmul.mubr.f32.gmra.mrb[0].mxu0 %v408
        %v505 = vpop.f32.mrb[0].mxu0
        %v506 = vadd.f32 0.0, %v505
        %v507 = vpop.f32.mrb[0].mxu0
        %508 = vmatprep.mubr.f32.mxu0 0.0
        %509 = vmatmul.mubr.f32.gmra.mrb[0].mxu0 %v411
        %v510 = vpop.f32.mrb[0].mxu0
        %v511 = vadd.f32 0.0, %v510
        %v512 = vpop.f32.mrb[0].mxu0
        %513 = vmatprep.mubr.f32.mxu0 0.0
        %514 = vmatmul.mubr.f32.gmra.mrb[0].mxu0 %v414
        %v515 = vpop.f32.mrb[0].mxu0
        %v516 = vadd.f32 0.0, %v515
        %v517 = vpop.f32.mrb[0].mxu0
        %518 = vmatprep.mubr.f32.mxu0 0.0
        %519 = vmatmul.mubr.f32.gmra.mrb[0].mxu0 %v417
        %v520 = vpop.f32.mrb[0].mxu0
        %v521 = vadd.f32 0.0, %v520
        %v522 = vpop.f32.mrb[0].mxu0
        %523 = vdwg.mxu0
        %v524 = vsub.f32 %v353, %v486
        %v525 = vsub.f32 %v358, %v491
        %v526 = vsub.f32 %v363, %v496
        %v527 = vsub.f32 %v368, %v501
        %v528 = vsub.f32 %v373, %v506
        %v529 = vsub.f32 %v378, %v511
        %v530 = vsub.f32 %v383, %v516
        %v531 = vsub.f32 %v388, %v521
        %v532 = vmul.f32 %v524, %v524
        %v533 = vmul.f32 %v525, %v525
        %v534 = vmul.f32 %v526, %v526
        %v535 = vmul.f32 %v527, %v527
        %v536 = vmul.f32 %v528, %v528
        %v537 = vmul.f32 %v529, %v529
        %v538 = vmul.f32 %v530, %v530
        %v539 = vmul.f32 %v531, %v531
        %v541 = vsel %vm261, %v532, 0
        %v544 = vsel %vm261, %v533, 0
        %v547 = vsel %vm261, %v534, 0
        %v550 = vsel %vm261, %v535, 0
        %v553 = vsel %vm261, %v536, 0
        %v556 = vsel %vm261, %v537, 0
        %v559 = vsel %vm261, %v538, 0
        %v562 = vsel %vm261, %v539, 0
        %564 = vmatprep.subr.mxu0 0.0
        %565 = vmatpush1.msra.mxu0 %v391
        %566 = vmatprep.subr.mxu0 0.0
        %567 = vmatpush1.msra.mxu0 %v392
        %568 = vmatprep.subr.mxu0 0.0
        %569 = vmatpush1.msra.mxu0 %v393
        %570 = vmatprep.subr.mxu0 0.0
        %571 = vmatpush1.msra.mxu0 %v394
        %572 = vmatprep.subr.mxu0 0.0
        %573 = vmatpush1.msra.mxu0 0.0
        %574 = vmatprep.subr.mxu0 0.0
        %575 = vmatpush1.msra.mxu0 0.0
        %576 = vmatprep.subr.mxu0 0.0
        %577 = vmatpush1.msra.mxu0 0.0
        %578 = vmatprep.subr.mxu0 0.0
        %579 = vmatpush1.msra.mxu0 0.0
        %580 = vmatprep.subr.mxu0 0.0
        %581 = vmatpush1.msra.mxu0 0.0
        %582 = vmatprep.subr.mxu0 0.0
        %583 = vmatpush1.msra.mxu0 0.0
        %584 = vmatprep.subr.mxu0 0.0
        %585 = vmatpush1.msra.mxu0 0.0
        %586 = vmatprep.subr.mxu0 0.0
        %587 = vmatpush1.msra.mxu0 0.0
        %588 = vmatprep.subr.mxu0 0.0
        %589 = vmatpush1.msra.mxu0 0.0
        %590 = vmatprep.subr.mxu0 0.0
        %591 = vmatpush1.msra.mxu0 0.0
        %592 = vmatprep.subr.mxu0 0.0
        %593 = vmatpush1.msra.mxu0 0.0
        %594 = vmatprep.subr.mxu0 0.0
        %595 = vmatpush1.msra.mxu0 0.0
        %596 = vmatprep.subr.mxu0 0.0
        %597 = vmatpush1.msra.mxu0 0.0
        %598 = vmatprep.subr.mxu0 0.0
        %599 = vmatpush1.msra.mxu0 0.0
        %600 = vmatprep.subr.mxu0 0.0
        %601 = vmatpush1.msra.mxu0 0.0
        %602 = vmatprep.subr.mxu0 0.0
        %603 = vmatpush1.msra.mxu0 0.0
        %604 = vmatprep.subr.mxu0 0.0
        %605 = vmatpush1.msra.mxu0 0.0
        %606 = vmatprep.subr.mxu0 0.0
        %607 = vmatpush1.msra.mxu0 0.0
        %608 = vmatprep.subr.mxu0 0.0
        %609 = vmatpush1.msra.mxu0 0.0
        %610 = vmatprep.subr.mxu0 0.0
        %611 = vmatpush1.msra.mxu0 0.0
        %612 = vmatprep.subr.mxu0 0.0
        %613 = vmatpush1.msra.mxu0 0.0
        %614 = vmatprep.subr.mxu0 0.0
        %615 = vmatpush1.msra.mxu0 0.0
        %616 = vmatprep.subr.mxu0 0.0
        %617 = vmatpush1.msra.mxu0 0.0
        %618 = vmatprep.subr.mxu0 0.0
        %619 = vmatpush1.msra.mxu0 0.0
        %620 = vmatprep.subr.mxu0 0.0
        %621 = vmatpush1.msra.mxu0 0.0
        %622 = vmatprep.subr.mxu0 0.0
        %623 = vmatpush1.msra.mxu0 0.0
        %624 = vmatprep.subr.mxu0 0.0
        %625 = vmatpush1.msra.mxu0 0.0
        %626 = vmatprep.subr.mxu0 0.0
        %627 = vmatpush1.msra.mxu0 0.0
        %628 = vmatprep.mubr.f32.mxu0 0.0
        %629 = vmatmul.mubr.f32.gmra.mrb[0].mxu0 %v541
        %v630 = vpop.f32.mrb[0].mxu0
        %v631 = vadd.f32 1e-05, %v630
        %v632 = vpop.f32.mrb[0].mxu0
        %633 = vmatprep.mubr.f32.mxu0 0.0
        %634 = vmatmul.mubr.f32.gmra.mrb[0].mxu0 %v544
        %v635 = vpop.f32.mrb[0].mxu0
        %v636 = vadd.f32 1e-05, %v635
        %v637 = vpop.f32.mrb[0].mxu0
        %638 = vmatprep.mubr.f32.mxu0 0.0
        %639 = vmatmul.mubr.f32.gmra.mrb[0].mxu0 %v547
        %v640 = vpop.f32.mrb[0].mxu0
        %v641 = vadd.f32 1e-05, %v640
        %v642 = vpop.f32.mrb[0].mxu0
        %643 = vmatprep.mubr.f32.mxu0 0.0
        %644 = vmatmul.mubr.f32.gmra.mrb[0].mxu0 %v550
        %v645 = vpop.f32.mrb[0].mxu0
        %v646 = vadd.f32 1e-05, %v645
        %v647 = vpop.f32.mrb[0].mxu0
        %648 = vmatprep.mubr.f32.mxu0 0.0
        %649 = vmatmul.mubr.f32.gmra.mrb[0].mxu0 %v553
        %v650 = vpop.f32.mrb[0].mxu0
        %v651 = vadd.f32 1e-05, %v650
        %v652 = vpop.f32.mrb[0].mxu0
        %653 = vmatprep.mubr.f32.mxu0 0.0
        %654 = vmatmul.mubr.f32.gmra.mrb[0].mxu0 %v556
        %v655 = vpop.f32.mrb[0].mxu0
        %v656 = vadd.f32 1e-05, %v655
        %v657 = vpop.f32.mrb[0].mxu0
        %658 = vmatprep.mubr.f32.mxu0 0.0
        %659 = vmatmul.mubr.f32.gmra.mrb[0].mxu0 %v559
        %v660 = vpop.f32.mrb[0].mxu0
        %v661 = vadd.f32 1e-05, %v660
        %v662 = vpop.f32.mrb[0].mxu0
        %663 = vmatprep.mubr.f32.mxu0 0.0
        %664 = vmatmul.mubr.f32.gmra.mrb[0].mxu0 %v562
        %v665 = vpop.f32.mrb[0].mxu0
        %v666 = vadd.f32 1e-05, %v665
        %v667 = vpop.f32.mrb[0].mxu0
        %668 = vdwg.mxu0
        %v669 = vrsqrt.pop %v631
        %v670 = vrsqrt.pop %v636
        %v671 = vrsqrt.pop %v641
        %v672 = vrsqrt.pop %v646
        %v673 = vrsqrt.pop %v651
        %v674 = vrsqrt.pop %v656
        %v675 = vrsqrt.pop %v661
        %v676 = vrsqrt.pop %v666
        %v677 = vmul.f32 %v524, %v669
        %v678 = vmul.f32 %v525, %v670
        %v679 = vmul.f32 %v526, %v671
        %v680 = vmul.f32 %v527, %v672
        %v681 = vmul.f32 %v528, %v673
        %v682 = vmul.f32 %v529, %v674
        %v683 = vmul.f32 %v530, %v675
        %v684 = vmul.f32 %v531, %v676
        %v685 = vld [vmem:[%s3] sm:$0x1]
        %v687 = vlaneseq
        %v688 = vshrl.u32 %v687, 7
        %v689 = vsub.s32 0, %v688
        %v690 = vrot.slane %v685, %v689
        %v692 = vmul.f32 %v677, %v690
        %v693 = vmul.f32 %v678, %v690
        %v694 = vmul.f32 %v679, %v690
        %v695 = vmul.f32 %v680, %v690
        %v696 = vmul.f32 %v681, %v690
        %v697 = vmul.f32 %v682, %v690
        %v698 = vmul.f32 %v683, %v690
        %v699 = vmul.f32 %v684, %v690
        %v700 = vld [vmem:[%s4] sm:$0x1]
        %v702 = vlaneseq
        %v703 = vshrl.u32 %v702, 7
        %v704 = vsub.s32 0, %v703
        %v705 = vrot.slane %v700, %v704
        %v707 = vadd.f32 %v692, %v705
        %v708 = vadd.f32 %v693, %v705
        %v709 = vadd.f32 %v694, %v705
        %v710 = vadd.f32 %v695, %v705
        %v711 = vadd.f32 %v696, %v705
        %v712 = vadd.f32 %v697, %v705
        %v713 = vadd.f32 %v698, %v705
        %v714 = vadd.f32 %v699, %v705
        %715 = vst.msk [vmem:[%s247] sm:$0xff] %vm261, %v707
        %716 = vst.msk [vmem:[%s247 + $0x20] sm:$0xff] %vm261, %v708
        %717 = vst.msk [vmem:[%s247 + $0x40] sm:$0xff] %vm261, %v709
        %718 = vst.msk [vmem:[%s247 + $0x60] sm:$0xff] %vm261, %v710
        %719 = vst.msk [vmem:[%s247 + $0x80] sm:$0xff] %vm261, %v711
        %720 = vst.msk [vmem:[%s247 + $0xa0] sm:$0xff] %vm261, %v712
        %721 = vst.msk [vmem:[%s247 + $0xc0] sm:$0xff] %vm261, %v713
        %722 = vst.msk [vmem:[%s247 + $0xe0] sm:$0xff] %vm261, %v714
        %v723 = vld [vmem:[%s2] sm:$0xff]
        %v724 = vld [vmem:[%s2 + $0x8] sm:$0xff]
        %v725 = vld [vmem:[%s2 + $0x10] sm:$0xff]
        %v726 = vld [vmem:[%s2 + $0x18] sm:$0xff]
        %727 = vrot.lane.b32.xlu0 %v353, 96
        %v728 = vpop.permute.xlu0 %727
        %729 = vrot.lane.b32.xlu0 %v358, 96
        %v730 = vpop.permute.xlu0 %729
        %731 = vrot.lane.b32.xlu0 %v363, 96
        %v732 = vpop.permute.xlu0 %731
        %733 = vrot.lane.b32.xlu0 %v368, 96
        %v734 = vpop.permute.xlu0 %733
        %735 = vrot.lane.b32.xlu0 %v373, 96
        %v736 = vpop.permute.xlu0 %735
        %737 = vrot.lane.b32.xlu0 %v378, 96
        %v738 = vpop.permute.xlu0 %737
        %739 = vrot.lane.b32.xlu0 %v383, 96
        %v740 = vpop.permute.xlu0 %739
        %741 = vrot.lane.b32.xlu0 %v388, 96
        %v742 = vpop.permute.xlu0 %741
        %v743 = vsel %vm261, %v728, 0
        %v745 = vsel %vm261, %v730, 0
        %v747 = vsel %vm261, %v732, 0
        %v749 = vsel %vm261, %v734, 0
        %v751 = vsel %vm261, %v736, 0
        %v753 = vsel %vm261, %v738, 0
        %v755 = vsel %vm261, %v740, 0
        %v757 = vsel %vm261, %v742, 0
        %759 = vmatprep.subr.mxu0 0.0
        %760 = vmatpush1.msra.mxu0 %v723
        %761 = vmatprep.subr.mxu0 0.0
        %762 = vmatpush1.msra.mxu0 %v724
        %763 = vmatprep.subr.mxu0 0.0
        %764 = vmatpush1.msra.mxu0 %v725
        %765 = vmatprep.subr.mxu0 0.0
        %766 = vmatpush1.msra.mxu0 %v726
        %767 = vmatprep.subr.mxu0 0.0
        %768 = vmatpush1.msra.mxu0 0.0
        %769 = vmatprep.subr.mxu0 0.0
        %770 = vmatpush1.msra.mxu0 0.0
        %771 = vmatprep.subr.mxu0 0.0
        %772 = vmatpush1.msra.mxu0 0.0
        %773 = vmatprep.subr.mxu0 0.0
        %774 = vmatpush1.msra.mxu0 0.0
        %775 = vmatprep.subr.mxu0 0.0
        %776 = vmatpush1.msra.mxu0 0.0
        %777 = vmatprep.subr.mxu0 0.0
        %778 = vmatpush1.msra.mxu0 0.0
        %779 = vmatprep.subr.mxu0 0.0
        %780 = vmatpush1.msra.mxu0 0.0
        %781 = vmatprep.subr.mxu0 0.0
        %782 = vmatpush1.msra.mxu0 0.0
        %783 = vmatprep.subr.mxu0 0.0
        %784 = vmatpush1.msra.mxu0 0.0
        %785 = vmatprep.subr.mxu0 0.0
        %786 = vmatpush1.msra.mxu0 0.0
        %787 = vmatprep.subr.mxu0 0.0
        %788 = vmatpush1.msra.mxu0 0.0
        %789 = vmatprep.subr.mxu0 0.0
        %790 = vmatpush1.msra.mxu0 0.0
        %791 = vmatprep.subr.mxu0 0.0
        %792 = vmatpush1.msra.mxu0 0.0
        %793 = vmatprep.subr.mxu0 0.0
        %794 = vmatpush1.msra.mxu0 0.0
        %795 = vmatprep.subr.mxu0 0.0
        %796 = vmatpush1.msra.mxu0 0.0
        %797 = vmatprep.subr.mxu0 0.0
        %798 = vmatpush1.msra.mxu0 0.0
        %799 = vmatprep.subr.mxu0 0.0
        %800 = vmatpush1.msra.mxu0 0.0
        %801 = vmatprep.subr.mxu0 0.0
        %802 = vmatpush1.msra.mxu0 0.0
        %803 = vmatprep.subr.mxu0 0.0
        %804 = vmatpush1.msra.mxu0 0.0
        %805 = vmatprep.subr.mxu0 0.0
        %806 = vmatpush1.msra.mxu0 0.0
        %807 = vmatprep.subr.mxu0 0.0
        %808 = vmatpush1.msra.mxu0 0.0
        %809 = vmatprep.subr.mxu0 0.0
        %810 = vmatpush1.msra.mxu0 0.0
        %811 = vmatprep.subr.mxu0 0.0
        %812 = vmatpush1.msra.mxu0 0.0
        %813 = vmatprep.subr.mxu0 0.0
        %814 = vmatpush1.msra.mxu0 0.0
        %815 = vmatprep.subr.mxu0 0.0
        %816 = vmatpush1.msra.mxu0 0.0
        %817 = vmatprep.subr.mxu0 0.0
        %818 = vmatpush1.msra.mxu0 0.0
        %819 = vmatprep.subr.mxu0 0.0
        %820 = vmatpush1.msra.mxu0 0.0
        %821 = vmatprep.subr.mxu0 0.0
        %822 = vmatpush1.msra.mxu0 0.0
        %823 = vmatprep.mubr.f32.mxu0 0.0
        %824 = vmatmul.mubr.f32.gmra.mrb[0].mxu0 %v743
        %v825 = vpop.f32.mrb[0].mxu0
        %v826 = vadd.f32 0.0, %v825
        %v827 = vpop.f32.mrb[0].mxu0
        %828 = vmatprep.mubr.f32.mxu0 0.0
        %829 = vmatmul.mubr.f32.gmra.mrb[0].mxu0 %v745
        %v830 = vpop.f32.mrb[0].mxu0
        %v831 = vadd.f32 0.0, %v830
        %v832 = vpop.f32.mrb[0].mxu0
        %833 = vmatprep.mubr.f32.mxu0 0.0
        %834 = vmatmul.mubr.f32.gmra.mrb[0].mxu0 %v747
        %v835 = vpop.f32.mrb[0].mxu0
        %v836 = vadd.f32 0.0, %v835
        %v837 = vpop.f32.mrb[0].mxu0
        %838 = vmatprep.mubr.f32.mxu0 0.0
        %839 = vmatmul.mubr.f32.gmra.mrb[0].mxu0 %v749
        %v840 = vpop.f32.mrb[0].mxu0
        %v841 = vadd.f32 0.0, %v840
        %v842 = vpop.f32.mrb[0].mxu0
        %843 = vmatprep.mubr.f32.mxu0 0.0
        %844 = vmatmul.mubr.f32.gmra.mrb[0].mxu0 %v751
        %v845 = vpop.f32.mrb[0].mxu0
        %v846 = vadd.f32 0.0, %v845
        %v847 = vpop.f32.mrb[0].mxu0
        %848 = vmatprep.mubr.f32.mxu0 0.0
        %849 = vmatmul.mubr.f32.gmra.mrb[0].mxu0 %v753
        %v850 = vpop.f32.mrb[0].mxu0
        %v851 = vadd.f32 0.0, %v850
        %v852 = vpop.f32.mrb[0].mxu0
        %853 = vmatprep.mubr.f32.mxu0 0.0
        %854 = vmatmul.mubr.f32.gmra.mrb[0].mxu0 %v755
        %v855 = vpop.f32.mrb[0].mxu0
        %v856 = vadd.f32 0.0, %v855
        %v857 = vpop.f32.mrb[0].mxu0
        %858 = vmatprep.mubr.f32.mxu0 0.0
        %859 = vmatmul.mubr.f32.gmra.mrb[0].mxu0 %v757
        %v860 = vpop.f32.mrb[0].mxu0
        %v861 = vadd.f32 0.0, %v860
        %v862 = vpop.f32.mrb[0].mxu0
        %863 = vdwg.mxu0
        %872 = vrot.lane.b32.xlu0 %v826, 32
        %v873 = vpop.permute.xlu0 %872
        %874 = vrot.lane.b32.xlu0 %v831, 32
        %v875 = vpop.permute.xlu0 %874
        %876 = vrot.lane.b32.xlu0 %v836, 32
        %v877 = vpop.permute.xlu0 %876
        %878 = vrot.lane.b32.xlu0 %v841, 32
        %v879 = vpop.permute.xlu0 %878
        %880 = vrot.lane.b32.xlu0 %v846, 32
        %v881 = vpop.permute.xlu0 %880
        %882 = vrot.lane.b32.xlu0 %v851, 32
        %v883 = vpop.permute.xlu0 %882
        %884 = vrot.lane.b32.xlu0 %v856, 32
        %v885 = vpop.permute.xlu0 %884
        %886 = vrot.lane.b32.xlu0 %v861, 32
        %v887 = vpop.permute.xlu0 %886
        %v896 = vsub.f32 %v353, %v873
        %v897 = vsub.f32 %v358, %v875
        %v898 = vsub.f32 %v363, %v877
        %v899 = vsub.f32 %v368, %v879
        %v900 = vsub.f32 %v373, %v881
        %v901 = vsub.f32 %v378, %v883
        %v902 = vsub.f32 %v383, %v885
        %v903 = vsub.f32 %v388, %v887
        %v904 = vmul.f32 %v896, %v896
        %v905 = vmul.f32 %v897, %v897
        %v906 = vmul.f32 %v898, %v898
        %v907 = vmul.f32 %v899, %v899
        %v908 = vmul.f32 %v900, %v900
        %v909 = vmul.f32 %v901, %v901
        %v910 = vmul.f32 %v902, %v902
        %v911 = vmul.f32 %v903, %v903
        %920 = vrot.lane.b32.xlu0 %v904, 96
        %v921 = vpop.permute.xlu0 %920
        %922 = vrot.lane.b32.xlu0 %v905, 96
        %v923 = vpop.permute.xlu0 %922
        %924 = vrot.lane.b32.xlu0 %v906, 96
        %v925 = vpop.permute.xlu0 %924
        %926 = vrot.lane.b32.xlu0 %v907, 96
        %v927 = vpop.permute.xlu0 %926
        %928 = vrot.lane.b32.xlu0 %v908, 96
        %v929 = vpop.permute.xlu0 %928
        %930 = vrot.lane.b32.xlu0 %v909, 96
        %v931 = vpop.permute.xlu0 %930
        %932 = vrot.lane.b32.xlu0 %v910, 96
        %v933 = vpop.permute.xlu0 %932
        %934 = vrot.lane.b32.xlu0 %v911, 96
        %v935 = vpop.permute.xlu0 %934
        %v936 = vsel %vm261, %v921, 0
        %v938 = vsel %vm261, %v923, 0
        %v940 = vsel %vm261, %v925, 0
        %v942 = vsel %vm261, %v927, 0
        %v944 = vsel %vm261, %v929, 0
        %v946 = vsel %vm261, %v931, 0
        %v948 = vsel %vm261, %v933, 0
        %v950 = vsel %vm261, %v935, 0
        %952 = vmatprep.subr.mxu0 0.0
        %953 = vmatpush1.msra.mxu0 %v723
        %954 = vmatprep.subr.mxu0 0.0
        %955 = vmatpush1.msra.mxu0 %v724
        %956 = vmatprep.subr.mxu0 0.0
        %957 = vmatpush1.msra.mxu0 %v725
        %958 = vmatprep.subr.mxu0 0.0
        %959 = vmatpush1.msra.mxu0 %v726
        %960 = vmatprep.subr.mxu0 0.0
        %961 = vmatpush1.msra.mxu0 0.0
        %962 = vmatprep.subr.mxu0 0.0
        %963 = vmatpush1.msra.mxu0 0.0
        %964 = vmatprep.subr.mxu0 0.0
        %965 = vmatpush1.msra.mxu0 0.0
        %966 = vmatprep.subr.mxu0 0.0
        %967 = vmatpush1.msra.mxu0 0.0
        %968 = vmatprep.subr.mxu0 0.0
        %969 = vmatpush1.msra.mxu0 0.0
        %970 = vmatprep.subr.mxu0 0.0
        %971 = vmatpush1.msra.mxu0 0.0
        %972 = vmatprep.subr.mxu0 0.0
        %973 = vmatpush1.msra.mxu0 0.0
        %974 = vmatprep.subr.mxu0 0.0
        %975 = vmatpush1.msra.mxu0 0.0
        %976 = vmatprep.subr.mxu0 0.0
        %977 = vmatpush1.msra.mxu0 0.0
        %978 = vmatprep.subr.mxu0 0.0
        %979 = vmatpush1.msra.mxu0 0.0
        %980 = vmatprep.subr.mxu0 0.0
        %981 = vmatpush1.msra.mxu0 0.0
        %982 = vmatprep.subr.mxu0 0.0
        %983 = vmatpush1.msra.mxu0 0.0
        %984 = vmatprep.subr.mxu0 0.0
        %985 = vmatpush1.msra.mxu0 0.0
        %986 = vmatprep.subr.mxu0 0.0
        %987 = vmatpush1.msra.mxu0 0.0
        %988 = vmatprep.subr.mxu0 0.0
        %989 = vmatpush1.msra.mxu0 0.0
        %990 = vmatprep.subr.mxu0 0.0
        %991 = vmatpush1.msra.mxu0 0.0
        %992 = vmatprep.subr.mxu0 0.0
        %993 = vmatpush1.msra.mxu0 0.0
        %994 = vmatprep.subr.mxu0 0.0
        %995 = vmatpush1.msra.mxu0 0.0
        %996 = vmatprep.subr.mxu0 0.0
        %997 = vmatpush1.msra.mxu0 0.0
        %998 = vmatprep.subr.mxu0 0.0
        %999 = vmatpush1.msra.mxu0 0.0
        %1000 = vmatprep.subr.mxu0 0.0
        %1001 = vmatpush1.msra.mxu0 0.0
        %1002 = vmatprep.subr.mxu0 0.0
        %1003 = vmatpush1.msra.mxu0 0.0
        %1004 = vmatprep.subr.mxu0 0.0
        %1005 = vmatpush1.msra.mxu0 0.0
        %1006 = vmatprep.subr.mxu0 0.0
        %1007 = vmatpush1.msra.mxu0 0.0
        %1008 = vmatprep.subr.mxu0 0.0
        %1009 = vmatpush1.msra.mxu0 0.0
        %1010 = vmatprep.subr.mxu0 0.0
        %1011 = vmatpush1.msra.mxu0 0.0
        %1012 = vmatprep.subr.mxu0 0.0
        %1013 = vmatpush1.msra.mxu0 0.0
        %1014 = vmatprep.subr.mxu0 0.0
        %1015 = vmatpush1.msra.mxu0 0.0
        %1016 = vmatprep.mubr.f32.mxu0 0.0
        %1017 = vmatmul.mubr.f32.gmra.mrb[0].mxu0 %v936
        %v1018 = vpop.f32.mrb[0].mxu0
        %v1019 = vadd.f32 1e-05, %v1018
        %v1020 = vpop.f32.mrb[0].mxu0
        %1021 = vmatprep.mubr.f32.mxu0 0.0
        %1022 = vmatmul.mubr.f32.gmra.mrb[0].mxu0 %v938
        %v1023 = vpop.f32.mrb[0].mxu0
        %v1024 = vadd.f32 1e-05, %v1023
        %v1025 = vpop.f32.mrb[0].mxu0
        %1026 = vmatprep.mubr.f32.mxu0 0.0
        %1027 = vmatmul.mubr.f32.gmra.mrb[0].mxu0 %v940
        %v1028 = vpop.f32.mrb[0].mxu0
        %v1029 = vadd.f32 1e-05, %v1028
        %v1030 = vpop.f32.mrb[0].mxu0
        %1031 = vmatprep.mubr.f32.mxu0 0.0
        %1032 = vmatmul.mubr.f32.gmra.mrb[0].mxu0 %v942
        %v1033 = vpop.f32.mrb[0].mxu0
        %v1034 = vadd.f32 1e-05, %v1033
        %v1035 = vpop.f32.mrb[0].mxu0
        %1036 = vmatprep.mubr.f32.mxu0 0.0
        %1037 = vmatmul.mubr.f32.gmra.mrb[0].mxu0 %v944
        %v1038 = vpop.f32.mrb[0].mxu0
        %v1039 = vadd.f32 1e-05, %v1038
        %v1040 = vpop.f32.mrb[0].mxu0
        %1041 = vmatprep.mubr.f32.mxu0 0.0
        %1042 = vmatmul.mubr.f32.gmra.mrb[0].mxu0 %v946
        %v1043 = vpop.f32.mrb[0].mxu0
        %v1044 = vadd.f32 1e-05, %v1043
        %v1045 = vpop.f32.mrb[0].mxu0
        %1046 = vmatprep.mubr.f32.mxu0 0.0
        %1047 = vmatmul.mubr.f32.gmra.mrb[0].mxu0 %v948
        %v1048 = vpop.f32.mrb[0].mxu0
        %v1049 = vadd.f32 1e-05, %v1048
        %v1050 = vpop.f32.mrb[0].mxu0
        %1051 = vmatprep.mubr.f32.mxu0 0.0
        %1052 = vmatmul.mubr.f32.gmra.mrb[0].mxu0 %v950
        %v1053 = vpop.f32.mrb[0].mxu0
        %v1054 = vadd.f32 1e-05, %v1053
        %v1055 = vpop.f32.mrb[0].mxu0
        %1056 = vdwg.mxu0
        %v1057 = vrsqrt.pop %v1019
        %v1058 = vrsqrt.pop %v1024
        %v1059 = vrsqrt.pop %v1029
        %v1060 = vrsqrt.pop %v1034
        %v1061 = vrsqrt.pop %v1039
        %v1062 = vrsqrt.pop %v1044
        %v1063 = vrsqrt.pop %v1049
        %v1064 = vrsqrt.pop %v1054
        %1073 = vrot.lane.b32.xlu0 %v1057, 32
        %v1074 = vpop.permute.xlu0 %1073
        %1075 = vrot.lane.b32.xlu0 %v1058, 32
        %v1076 = vpop.permute.xlu0 %1075
        %1077 = vrot.lane.b32.xlu0 %v1059, 32
        %v1078 = vpop.permute.xlu0 %1077
        %1079 = vrot.lane.b32.xlu0 %v1060, 32
        %v1080 = vpop.permute.xlu0 %1079
        %1081 = vrot.lane.b32.xlu0 %v1061, 32
        %v1082 = vpop.permute.xlu0 %1081
        %1083 = vrot.lane.b32.xlu0 %v1062, 32
        %v1084 = vpop.permute.xlu0 %1083
        %1085 = vrot.lane.b32.xlu0 %v1063, 32
        %v1086 = vpop.permute.xlu0 %1085
        %1087 = vrot.lane.b32.xlu0 %v1064, 32
        %v1088 = vpop.permute.xlu0 %1087
        %v1097 = vmul.f32 %v896, %v1074
        %v1098 = vmul.f32 %v897, %v1076
        %v1099 = vmul.f32 %v898, %v1078
        %v1100 = vmul.f32 %v899, %v1080
        %v1101 = vmul.f32 %v900, %v1082
        %v1102 = vmul.f32 %v901, %v1084
        %v1103 = vmul.f32 %v902, %v1086
        %v1104 = vmul.f32 %v903, %v1088
        %v1105 = vld [vmem:[%s3] sm:$0x1]
        %v1107 = vlaneseq
        %v1108 = vshrl.u32 %v1107, 7
        %v1109 = vsub.s32 0, %v1108
        %v1110 = vrot.slane %v1105, %v1109
        %1111 = vrot.lane.b32.xlu0 %v1110, 32
        %v1112 = vpop.permute.xlu0 %1111
        %v1114 = vmul.f32 %v1097, %v1112
        %v1115 = vmul.f32 %v1098, %v1112
        %v1116 = vmul.f32 %v1099, %v1112
        %v1117 = vmul.f32 %v1100, %v1112
        %v1118 = vmul.f32 %v1101, %v1112
        %v1119 = vmul.f32 %v1102, %v1112
        %v1120 = vmul.f32 %v1103, %v1112
        %v1121 = vmul.f32 %v1104, %v1112
        %v1122 = vld [vmem:[%s4] sm:$0x1]
        %v1124 = vlaneseq
        %v1125 = vshrl.u32 %v1124, 7
        %v1126 = vsub.s32 0, %v1125
        %v1127 = vrot.slane %v1122, %v1126
        %1128 = vrot.lane.b32.xlu0 %v1127, 32
        %v1129 = vpop.permute.xlu0 %1128
        %v1131 = vadd.f32 %v1114, %v1129
        %v1132 = vadd.f32 %v1115, %v1129
        %v1133 = vadd.f32 %v1116, %v1129
        %v1134 = vadd.f32 %v1117, %v1129
        %v1135 = vadd.f32 %v1118, %v1129
        %v1136 = vadd.f32 %v1119, %v1129
        %v1137 = vadd.f32 %v1120, %v1129
        %v1138 = vadd.f32 %v1121, %v1129
        %1147 = vrot.lane.b32.xlu0 %v1131, 96
        %v1148 = vpop.permute.xlu0 %1147
        %1149 = vrot.lane.b32.xlu0 %v1132, 96
        %v1150 = vpop.permute.xlu0 %1149
        %1151 = vrot.lane.b32.xlu0 %v1133, 96
        %v1152 = vpop.permute.xlu0 %1151
        %1153 = vrot.lane.b32.xlu0 %v1134, 96
        %v1154 = vpop.permute.xlu0 %1153
        %1155 = vrot.lane.b32.xlu0 %v1135, 96
        %v1156 = vpop.permute.xlu0 %1155
        %1157 = vrot.lane.b32.xlu0 %v1136, 96
        %v1158 = vpop.permute.xlu0 %1157
        %1159 = vrot.lane.b32.xlu0 %v1137, 96
        %v1160 = vpop.permute.xlu0 %1159
        %1161 = vrot.lane.b32.xlu0 %v1138, 96
        %v1162 = vpop.permute.xlu0 %1161
        %s1171 = scalar_lea.vmem %s247, 8
        %1172 = vst.msk [vmem:[%s1171] sm:$0xff] %vm261, %v1148
        %1173 = vst.msk [vmem:[%s1171 + $0x20] sm:$0xff] %vm261, %v1150
        %1174 = vst.msk [vmem:[%s1171 + $0x40] sm:$0xff] %vm261, %v1152
        %1175 = vst.msk [vmem:[%s1171 + $0x60] sm:$0xff] %vm261, %v1154
        %1176 = vst.msk [vmem:[%s1171 + $0x80] sm:$0xff] %vm261, %v1156
        %1177 = vst.msk [vmem:[%s1171 + $0xa0] sm:$0xff] %vm261, %v1158
        %1178 = vst.msk [vmem:[%s1171 + $0xc0] sm:$0xff] %vm261, %v1160
        %1179 = vst.msk [vmem:[%s1171 + $0xe0] sm:$0xff] %vm261, %v1162
        %v1180 = vld [vmem:[%s2] sm:$0xff]
        %v1181 = vld [vmem:[%s2 + $0x8] sm:$0xff]
        %v1182 = vld [vmem:[%s2 + $0x10] sm:$0xff]
        %v1183 = vld [vmem:[%s2 + $0x18] sm:$0xff]
        %1184 = vrot.lane.b32.xlu0 %v353, 64
        %v1185 = vpop.permute.xlu0 %1184
        %1186 = vrot.lane.b32.xlu0 %v358, 64
        %v1187 = vpop.permute.xlu0 %1186
        %1188 = vrot.lane.b32.xlu0 %v363, 64
        %v1189 = vpop.permute.xlu0 %1188
        %1190 = vrot.lane.b32.xlu0 %v368, 64
        %v1191 = vpop.permute.xlu0 %1190
        %1192 = vrot.lane.b32.xlu0 %v373, 64
        %v1193 = vpop.permute.xlu0 %1192
        %1194 = vrot.lane.b32.xlu0 %v378, 64
        %v1195 = vpop.permute.xlu0 %1194
        %1196 = vrot.lane.b32.xlu0 %v383, 64
        %v1197 = vpop.permute.xlu0 %1196
        %1198 = vrot.lane.b32.xlu0 %v388, 64
        %v1199 = vpop.permute.xlu0 %1198
        %v1200 = vsel %vm261, %v1185, 0
        %v1202 = vsel %vm261, %v1187, 0
        %v1204 = vsel %vm261, %v1189, 0
        %v1206 = vsel %vm261, %v1191, 0
        %v1208 = vsel %vm261, %v1193, 0
        %v1210 = vsel %vm261, %v1195, 0
        %v1212 = vsel %vm261, %v1197, 0
        %v1214 = vsel %vm261, %v1199, 0
        %1216 = vmatprep.subr.mxu0 0.0
        %1217 = vmatpush1.msra.mxu0 %v1180
        %1218 = vmatprep.subr.mxu0 0.0
        %1219 = vmatpush1.msra.mxu0 %v1181
        %1220 = vmatprep.subr.mxu0 0.0
        %1221 = vmatpush1.msra.mxu0 %v1182
        %1222 = vmatprep.subr.mxu0 0.0
        %1223 = vmatpush1.msra.mxu0 %v1183
        %1224 = vmatprep.subr.mxu0 0.0
        %1225 = vmatpush1.msra.mxu0 0.0
        %1226 = vmatprep.subr.mxu0 0.0
        %1227 = vmatpush1.msra.mxu0 0.0
        %1228 = vmatprep.subr.mxu0 0.0
        %1229 = vmatpush1.msra.mxu0 0.0
        %1230 = vmatprep.subr.mxu0 0.0
        %1231 = vmatpush1.msra.mxu0 0.0
        %1232 = vmatprep.subr.mxu0 0.0
        %1233 = vmatpush1.msra.mxu0 0.0
        %1234 = vmatprep.subr.mxu0 0.0
        %1235 = vmatpush1.msra.mxu0 0.0
        %1236 = vmatprep.subr.mxu0 0.0
        %1237 = vmatpush1.msra.mxu0 0.0
        %1238 = vmatprep.subr.mxu0 0.0
        %1239 = vmatpush1.msra.mxu0 0.0
        %1240 = vmatprep.subr.mxu0 0.0
        %1241 = vmatpush1.msra.mxu0 0.0
        %1242 = vmatprep.subr.mxu0 0.0
        %1243 = vmatpush1.msra.mxu0 0.0
        %1244 = vmatprep.subr.mxu0 0.0
        %1245 = vmatpush1.msra.mxu0 0.0
        %1246 = vmatprep.subr.mxu0 0.0
        %1247 = vmatpush1.msra.mxu0 0.0
        %1248 = vmatprep.subr.mxu0 0.0
        %1249 = vmatpush1.msra.mxu0 0.0
        %1250 = vmatprep.subr.mxu0 0.0
        %1251 = vmatpush1.msra.mxu0 0.0
        %1252 = vmatprep.subr.mxu0 0.0
        %1253 = vmatpush1.msra.mxu0 0.0
        %1254 = vmatprep.subr.mxu0 0.0
        %1255 = vmatpush1.msra.mxu0 0.0
        %1256 = vmatprep.subr.mxu0 0.0
        %1257 = vmatpush1.msra.mxu0 0.0
        %1258 = vmatprep.subr.mxu0 0.0
        %1259 = vmatpush1.msra.mxu0 0.0
        %1260 = vmatprep.subr.mxu0 0.0
        %1261 = vmatpush1.msra.mxu0 0.0
        %1262 = vmatprep.subr.mxu0 0.0
        %1263 = vmatpush1.msra.mxu0 0.0
        %1264 = vmatprep.subr.mxu0 0.0
        %1265 = vmatpush1.msra.mxu0 0.0
        %1266 = vmatprep.subr.mxu0 0.0
        %1267 = vmatpush1.msra.mxu0 0.0
        %1268 = vmatprep.subr.mxu0 0.0
        %1269 = vmatpush1.msra.mxu0 0.0
        %1270 = vmatprep.subr.mxu0 0.0
        %1271 = vmatpush1.msra.mxu0 0.0
        %1272 = vmatprep.subr.mxu0 0.0
        %1273 = vmatpush1.msra.mxu0 0.0
        %1274 = vmatprep.subr.mxu0 0.0
        %1275 = vmatpush1.msra.mxu0 0.0
        %1276 = vmatprep.subr.mxu0 0.0
        %1277 = vmatpush1.msra.mxu0 0.0
        %1278 = vmatprep.subr.mxu0 0.0
        %1279 = vmatpush1.msra.mxu0 0.0
        %1280 = vmatprep.mubr.f32.mxu0 0.0
        %1281 = vmatmul.mubr.f32.gmra.mrb[0].mxu0 %v1200
        %v1282 = vpop.f32.mrb[0].mxu0
        %v1283 = vadd.f32 0.0, %v1282
        %v1284 = vpop.f32.mrb[0].mxu0
        %1285 = vmatprep.mubr.f32.mxu0 0.0
        %1286 = vmatmul.mubr.f32.gmra.mrb[0].mxu0 %v1202
        %v1287 = vpop.f32.mrb[0].mxu0
        %v1288 = vadd.f32 0.0, %v1287
        %v1289 = vpop.f32.mrb[0].mxu0
        %1290 = vmatprep.mubr.f32.mxu0 0.0
        %1291 = vmatmul.mubr.f32.gmra.mrb[0].mxu0 %v1204
        %v1292 = vpop.f32.mrb[0].mxu0
        %v1293 = vadd.f32 0.0, %v1292
        %v1294 = vpop.f32.mrb[0].mxu0
        %1295 = vmatprep.mubr.f32.mxu0 0.0
        %1296 = vmatmul.mubr.f32.gmra.mrb[0].mxu0 %v1206
        %v1297 = vpop.f32.mrb[0].mxu0
        %v1298 = vadd.f32 0.0, %v1297
        %v1299 = vpop.f32.mrb[0].mxu0
        %1300 = vmatprep.mubr.f32.mxu0 0.0
        %1301 = vmatmul.mubr.f32.gmra.mrb[0].mxu0 %v1208
        %v1302 = vpop.f32.mrb[0].mxu0
        %v1303 = vadd.f32 0.0, %v1302
        %v1304 = vpop.f32.mrb[0].mxu0
        %1305 = vmatprep.mubr.f32.mxu0 0.0
        %1306 = vmatmul.mubr.f32.gmra.mrb[0].mxu0 %v1210
        %v1307 = vpop.f32.mrb[0].mxu0
        %v1308 = vadd.f32 0.0, %v1307
        %v1309 = vpop.f32.mrb[0].mxu0
        %1310 = vmatprep.mubr.f32.mxu0 0.0
        %1311 = vmatmul.mubr.f32.gmra.mrb[0].mxu0 %v1212
        %v1312 = vpop.f32.mrb[0].mxu0
        %v1313 = vadd.f32 0.0, %v1312
        %v1314 = vpop.f32.mrb[0].mxu0
        %1315 = vmatprep.mubr.f32.mxu0 0.0
        %1316 = vmatmul.mubr.f32.gmra.mrb[0].mxu0 %v1214
        %v1317 = vpop.f32.mrb[0].mxu0
        %v1318 = vadd.f32 0.0, %v1317
        %v1319 = vpop.f32.mrb[0].mxu0
        %1320 = vdwg.mxu0
        %1329 = vrot.lane.b32.xlu0 %v1283, 64
        %v1330 = vpop.permute.xlu0 %1329
        %1331 = vrot.lane.b32.xlu0 %v1288, 64
        %v1332 = vpop.permute.xlu0 %1331
        %1333 = vrot.lane.b32.xlu0 %v1293, 64
        %v1334 = vpop.permute.xlu0 %1333
        %1335 = vrot.lane.b32.xlu0 %v1298, 64
        %v1336 = vpop.permute.xlu0 %1335
        %1337 = vrot.lane.b32.xlu0 %v1303, 64
        %v1338 = vpop.permute.xlu0 %1337
        %1339 = vrot.lane.b32.xlu0 %v1308, 64
        %v1340 = vpop.permute.xlu0 %1339
        %1341 = vrot.lane.b32.xlu0 %v1313, 64
        %v1342 = vpop.permute.xlu0 %1341
        %1343 = vrot.lane.b32.xlu0 %v1318, 64
        %v1344 = vpop.permute.xlu0 %1343
        %v1353 = vsub.f32 %v353, %v1330
        %v1354 = vsub.f32 %v358, %v1332
        %v1355 = vsub.f32 %v363, %v1334
        %v1356 = vsub.f32 %v368, %v1336
        %v1357 = vsub.f32 %v373, %v1338
        %v1358 = vsub.f32 %v378, %v1340
        %v1359 = vsub.f32 %v383, %v1342
        %v1360 = vsub.f32 %v388, %v1344
        %v1361 = vmul.f32 %v1353, %v1353
        %v1362 = vmul.f32 %v1354, %v1354
        %v1363 = vmul.f32 %v1355, %v1355
        %v1364 = vmul.f32 %v1356, %v1356
        %v1365 = vmul.f32 %v1357, %v1357
        %v1366 = vmul.f32 %v1358, %v1358
        %v1367 = vmul.f32 %v1359, %v1359
        %v1368 = vmul.f32 %v1360, %v1360
        %1377 = vrot.lane.b32.xlu0 %v1361, 64
        %v1378 = vpop.permute.xlu0 %1377
        %1379 = vrot.lane.b32.xlu0 %v1362, 64
        %v1380 = vpop.permute.xlu0 %1379
        %1381 = vrot.lane.b32.xlu0 %v1363, 64
        %v1382 = vpop.permute.xlu0 %1381
        %1383 = vrot.lane.b32.xlu0 %v1364, 64
        %v1384 = vpop.permute.xlu0 %1383
        %1385 = vrot.lane.b32.xlu0 %v1365, 64
        %v1386 = vpop.permute.xlu0 %1385
        %1387 = vrot.lane.b32.xlu0 %v1366, 64
        %v1388 = vpop.permute.xlu0 %1387
        %1389 = vrot.lane.b32.xlu0 %v1367, 64
        %v1390 = vpop.permute.xlu0 %1389
        %1391 = vrot.lane.b32.xlu0 %v1368, 64
        %v1392 = vpop.permute.xlu0 %1391
        %v1393 = vsel %vm261, %v1378, 0
        %v1395 = vsel %vm261, %v1380, 0
        %v1397 = vsel %vm261, %v1382, 0
        %v1399 = vsel %vm261, %v1384, 0
        %v1401 = vsel %vm261, %v1386, 0
        %v1403 = vsel %vm261, %v1388, 0
        %v1405 = vsel %vm261, %v1390, 0
        %v1407 = vsel %vm261, %v1392, 0
        %1409 = vmatprep.subr.mxu0 0.0
        %1410 = vmatpush1.msra.mxu0 %v1180
        %1411 = vmatprep.subr.mxu0 0.0
        %1412 = vmatpush1.msra.mxu0 %v1181
        %1413 = vmatprep.subr.mxu0 0.0
        %1414 = vmatpush1.msra.mxu0 %v1182
        %1415 = vmatprep.subr.mxu0 0.0
        %1416 = vmatpush1.msra.mxu0 %v1183
        %1417 = vmatprep.subr.mxu0 0.0
        %1418 = vmatpush1.msra.mxu0 0.0
        %1419 = vmatprep.subr.mxu0 0.0
        %1420 = vmatpush1.msra.mxu0 0.0
        %1421 = vmatprep.subr.mxu0 0.0
        %1422 = vmatpush1.msra.mxu0 0.0
        %1423 = vmatprep.subr.mxu0 0.0
        %1424 = vmatpush1.msra.mxu0 0.0
        %1425 = vmatprep.subr.mxu0 0.0
        %1426 = vmatpush1.msra.mxu0 0.0
        %1427 = vmatprep.subr.mxu0 0.0
        %1428 = vmatpush1.msra.mxu0 0.0
        %1429 = vmatprep.subr.mxu0 0.0
        %1430 = vmatpush1.msra.mxu0 0.0
        %1431 = vmatprep.subr.mxu0 0.0
        %1432 = vmatpush1.msra.mxu0 0.0
        %1433 = vmatprep.subr.mxu0 0.0
        %1434 = vmatpush1.msra.mxu0 0.0
        %1435 = vmatprep.subr.mxu0 0.0
        %1436 = vmatpush1.msra.mxu0 0.0
        %1437 = vmatprep.subr.mxu0 0.0
        %1438 = vmatpush1.msra.mxu0 0.0
        %1439 = vmatprep.subr.mxu0 0.0
        %1440 = vmatpush1.msra.mxu0 0.0
        %1441 = vmatprep.subr.mxu0 0.0
        %1442 = vmatpush1.msra.mxu0 0.0
        %1443 = vmatprep.subr.mxu0 0.0
        %1444 = vmatpush1.msra.mxu0 0.0
        %1445 = vmatprep.subr.mxu0 0.0
        %1446 = vmatpush1.msra.mxu0 0.0
        %1447 = vmatprep.subr.mxu0 0.0
        %1448 = vmatpush1.msra.mxu0 0.0
        %1449 = vmatprep.subr.mxu0 0.0
        %1450 = vmatpush1.msra.mxu0 0.0
        %1451 = vmatprep.subr.mxu0 0.0
        %1452 = vmatpush1.msra.mxu0 0.0
        %1453 = vmatprep.subr.mxu0 0.0
        %1454 = vmatpush1.msra.mxu0 0.0
        %1455 = vmatprep.subr.mxu0 0.0
        %1456 = vmatpush1.msra.mxu0 0.0
        %1457 = vmatprep.subr.mxu0 0.0
        %1458 = vmatpush1.msra.mxu0 0.0
        %1459 = vmatprep.subr.mxu0 0.0
        %1460 = vmatpush1.msra.mxu0 0.0
        %1461 = vmatprep.subr.mxu0 0.0
        %1462 = vmatpush1.msra.mxu0 0.0
        %1463 = vmatprep.subr.mxu0 0.0
        %1464 = vmatpush1.msra.mxu0 0.0
        %1465 = vmatprep.subr.mxu0 0.0
        %1466 = vmatpush1.msra.mxu0 0.0
        %1467 = vmatprep.subr.mxu0 0.0
        %1468 = vmatpush1.msra.mxu0 0.0
        %1469 = vmatprep.subr.mxu0 0.0
        %1470 = vmatpush1.msra.mxu0 0.0
        %1471 = vmatprep.subr.mxu0 0.0
        %1472 = vmatpush1.msra.mxu0 0.0
        %1473 = vmatprep.mubr.f32.mxu0 0.0
        %1474 = vmatmul.mubr.f32.gmra.mrb[0].mxu0 %v1393
        %v1475 = vpop.f32.mrb[0].mxu0
        %v1476 = vadd.f32 1e-05, %v1475
        %v1477 = vpop.f32.mrb[0].mxu0
        %1478 = vmatprep.mubr.f32.mxu0 0.0
        %1479 = vmatmul.mubr.f32.gmra.mrb[0].mxu0 %v1395
        %v1480 = vpop.f32.mrb[0].mxu0
        %v1481 = vadd.f32 1e-05, %v1480
        %v1482 = vpop.f32.mrb[0].mxu0
        %1483 = vmatprep.mubr.f32.mxu0 0.0
        %1484 = vmatmul.mubr.f32.gmra.mrb[0].mxu0 %v1397
        %v1485 = vpop.f32.mrb[0].mxu0
        %v1486 = vadd.f32 1e-05, %v1485
        %v1487 = vpop.f32.mrb[0].mxu0
        %1488 = vmatprep.mubr.f32.mxu0 0.0
        %1489 = vmatmul.mubr.f32.gmra.mrb[0].mxu0 %v1399
        %v1490 = vpop.f32.mrb[0].mxu0
        %v1491 = vadd.f32 1e-05, %v1490
        %v1492 = vpop.f32.mrb[0].mxu0
        %1493 = vmatprep.mubr.f32.mxu0 0.0
        %1494 = vmatmul.mubr.f32.gmra.mrb[0].mxu0 %v1401
        %v1495 = vpop.f32.mrb[0].mxu0
        %v1496 = vadd.f32 1e-05, %v1495
        %v1497 = vpop.f32.mrb[0].mxu0
        %1498 = vmatprep.mubr.f32.mxu0 0.0
        %1499 = vmatmul.mubr.f32.gmra.mrb[0].mxu0 %v1403
        %v1500 = vpop.f32.mrb[0].mxu0
        %v1501 = vadd.f32 1e-05, %v1500
        %v1502 = vpop.f32.mrb[0].mxu0
        %1503 = vmatprep.mubr.f32.mxu0 0.0
        %1504 = vmatmul.mubr.f32.gmra.mrb[0].mxu0 %v1405
        %v1505 = vpop.f32.mrb[0].mxu0
        %v1506 = vadd.f32 1e-05, %v1505
        %v1507 = vpop.f32.mrb[0].mxu0
        %1508 = vmatprep.mubr.f32.mxu0 0.0
        %1509 = vmatmul.mubr.f32.gmra.mrb[0].mxu0 %v1407
        %v1510 = vpop.f32.mrb[0].mxu0
        %v1511 = vadd.f32 1e-05, %v1510
        %v1512 = vpop.f32.mrb[0].mxu0
        %1513 = vdwg.mxu0
        %v1514 = vrsqrt.pop %v1476
        %v1515 = vrsqrt.pop %v1481
        %v1516 = vrsqrt.pop %v1486
        %v1517 = vrsqrt.pop %v1491
        %v1518 = vrsqrt.pop %v1496
        %v1519 = vrsqrt.pop %v1501
        %v1520 = vrsqrt.pop %v1506
        %v1521 = vrsqrt.pop %v1511
        %1530 = vrot.lane.b32.xlu0 %v1514, 64
        %v1531 = vpop.permute.xlu0 %1530
        %1532 = vrot.lane.b32.xlu0 %v1515, 64
        %v1533 = vpop.permute.xlu0 %1532
        %1534 = vrot.lane.b32.xlu0 %v1516, 64
        %v1535 = vpop.permute.xlu0 %1534
        %1536 = vrot.lane.b32.xlu0 %v1517, 64
        %v1537 = vpop.permute.xlu0 %1536
        %1538 = vrot.lane.b32.xlu0 %v1518, 64
        %v1539 = vpop.permute.xlu0 %1538
        %1540 = vrot.lane.b32.xlu0 %v1519, 64
        %v1541 = vpop.permute.xlu0 %1540
        %1542 = vrot.lane.b32.xlu0 %v1520, 64
        %v1543 = vpop.permute.xlu0 %1542
        %1544 = vrot.lane.b32.xlu0 %v1521, 64
        %v1545 = vpop.permute.xlu0 %1544
        %v1554 = vmul.f32 %v1353, %v1531
        %v1555 = vmul.f32 %v1354, %v1533
        %v1556 = vmul.f32 %v1355, %v1535
        %v1557 = vmul.f32 %v1356, %v1537
        %v1558 = vmul.f32 %v1357, %v1539
        %v1559 = vmul.f32 %v1358, %v1541
        %v1560 = vmul.f32 %v1359, %v1543
        %v1561 = vmul.f32 %v1360, %v1545
        %v1562 = vld [vmem:[%s3] sm:$0x1]
        %v1564 = vlaneseq
        %v1565 = vshrl.u32 %v1564, 7
        %v1566 = vsub.s32 0, %v1565
        %v1567 = vrot.slane %v1562, %v1566
        %1568 = vrot.lane.b32.xlu0 %v1567, 64
        %v1569 = vpop.permute.xlu0 %1568
        %v1571 = vmul.f32 %v1554, %v1569
        %v1572 = vmul.f32 %v1555, %v1569
        %v1573 = vmul.f32 %v1556, %v1569
        %v1574 = vmul.f32 %v1557, %v1569
        %v1575 = vmul.f32 %v1558, %v1569
        %v1576 = vmul.f32 %v1559, %v1569
        %v1577 = vmul.f32 %v1560, %v1569
        %v1578 = vmul.f32 %v1561, %v1569
        %v1579 = vld [vmem:[%s4] sm:$0x1]
        %v1581 = vlaneseq
        %v1582 = vshrl.u32 %v1581, 7
        %v1583 = vsub.s32 0, %v1582
        %v1584 = vrot.slane %v1579, %v1583
        %1585 = vrot.lane.b32.xlu0 %v1584, 64
        %v1586 = vpop.permute.xlu0 %1585
        %v1588 = vadd.f32 %v1571, %v1586
        %v1589 = vadd.f32 %v1572, %v1586
        %v1590 = vadd.f32 %v1573, %v1586
        %v1591 = vadd.f32 %v1574, %v1586
        %v1592 = vadd.f32 %v1575, %v1586
        %v1593 = vadd.f32 %v1576, %v1586
        %v1594 = vadd.f32 %v1577, %v1586
        %v1595 = vadd.f32 %v1578, %v1586
        %1604 = vrot.lane.b32.xlu0 %v1588, 64
        %v1605 = vpop.permute.xlu0 %1604
        %1606 = vrot.lane.b32.xlu0 %v1589, 64
        %v1607 = vpop.permute.xlu0 %1606
        %1608 = vrot.lane.b32.xlu0 %v1590, 64
        %v1609 = vpop.permute.xlu0 %1608
        %1610 = vrot.lane.b32.xlu0 %v1591, 64
        %v1611 = vpop.permute.xlu0 %1610
        %1612 = vrot.lane.b32.xlu0 %v1592, 64
        %v1613 = vpop.permute.xlu0 %1612
        %1614 = vrot.lane.b32.xlu0 %v1593, 64
        %v1615 = vpop.permute.xlu0 %1614
        %1616 = vrot.lane.b32.xlu0 %v1594, 64
        %v1617 = vpop.permute.xlu0 %1616
        %1618 = vrot.lane.b32.xlu0 %v1595, 64
        %v1619 = vpop.permute.xlu0 %1618
        %s1628 = scalar_lea.vmem %s247, 16
        %1629 = vst.msk [vmem:[%s1628] sm:$0xff] %vm261, %v1605
        %1630 = vst.msk [vmem:[%s1628 + $0x20] sm:$0xff] %vm261, %v1607
        %1631 = vst.msk [vmem:[%s1628 + $0x40] sm:$0xff] %vm261, %v1609
        %1632 = vst.msk [vmem:[%s1628 + $0x60] sm:$0xff] %vm261, %v1611
        %1633 = vst.msk [vmem:[%s1628 + $0x80] sm:$0xff] %vm261, %v1613
        %1634 = vst.msk [vmem:[%s1628 + $0xa0] sm:$0xff] %vm261, %v1615
        %1635 = vst.msk [vmem:[%s1628 + $0xc0] sm:$0xff] %vm261, %v1617
        %1636 = vst.msk [vmem:[%s1628 + $0xe0] sm:$0xff] %vm261, %v1619
        %v1637 = vld [vmem:[%s2] sm:$0xff]
        %v1638 = vld [vmem:[%s2 + $0x8] sm:$0xff]
        %v1639 = vld [vmem:[%s2 + $0x10] sm:$0xff]
        %v1640 = vld [vmem:[%s2 + $0x18] sm:$0xff]
        %1641 = vrot.lane.b32.xlu0 %v353, 32
        %v1642 = vpop.permute.xlu0 %1641
        %1643 = vrot.lane.b32.xlu0 %v358, 32
        %v1644 = vpop.permute.xlu0 %1643
        %1645 = vrot.lane.b32.xlu0 %v363, 32
        %v1646 = vpop.permute.xlu0 %1645
        %1647 = vrot.lane.b32.xlu0 %v368, 32
        %v1648 = vpop.permute.xlu0 %1647
        %1649 = vrot.lane.b32.xlu0 %v373, 32
        %v1650 = vpop.permute.xlu0 %1649
        %1651 = vrot.lane.b32.xlu0 %v378, 32
        %v1652 = vpop.permute.xlu0 %1651
        %1653 = vrot.lane.b32.xlu0 %v383, 32
        %v1654 = vpop.permute.xlu0 %1653
        %1655 = vrot.lane.b32.xlu0 %v388, 32
        %v1656 = vpop.permute.xlu0 %1655
        %v1657 = vsel %vm261, %v1642, 0
        %v1659 = vsel %vm261, %v1644, 0
        %v1661 = vsel %vm261, %v1646, 0
        %v1663 = vsel %vm261, %v1648, 0
        %v1665 = vsel %vm261, %v1650, 0
        %v1667 = vsel %vm261, %v1652, 0
        %v1669 = vsel %vm261, %v1654, 0
        %v1671 = vsel %vm261, %v1656, 0
        %1673 = vmatprep.subr.mxu0 0.0
        %1674 = vmatpush1.msra.mxu0 %v1637
        %1675 = vmatprep.subr.mxu0 0.0
        %1676 = vmatpush1.msra.mxu0 %v1638
        %1677 = vmatprep.subr.mxu0 0.0
        %1678 = vmatpush1.msra.mxu0 %v1639
        %1679 = vmatprep.subr.mxu0 0.0
        %1680 = vmatpush1.msra.mxu0 %v1640
        %1681 = vmatprep.subr.mxu0 0.0
        %1682 = vmatpush1.msra.mxu0 0.0
        %1683 = vmatprep.subr.mxu0 0.0
        %1684 = vmatpush1.msra.mxu0 0.0
        %1685 = vmatprep.subr.mxu0 0.0
        %1686 = vmatpush1.msra.mxu0 0.0
        %1687 = vmatprep.subr.mxu0 0.0
        %1688 = vmatpush1.msra.mxu0 0.0
        %1689 = vmatprep.subr.mxu0 0.0
        %1690 = vmatpush1.msra.mxu0 0.0
        %1691 = vmatprep.subr.mxu0 0.0
        %1692 = vmatpush1.msra.mxu0 0.0
        %1693 = vmatprep.subr.mxu0 0.0
        %1694 = vmatpush1.msra.mxu0 0.0
        %1695 = vmatprep.subr.mxu0 0.0
        %1696 = vmatpush1.msra.mxu0 0.0
        %1697 = vmatprep.subr.mxu0 0.0
        %1698 = vmatpush1.msra.mxu0 0.0
        %1699 = vmatprep.subr.mxu0 0.0
        %1700 = vmatpush1.msra.mxu0 0.0
        %1701 = vmatprep.subr.mxu0 0.0
        %1702 = vmatpush1.msra.mxu0 0.0
        %1703 = vmatprep.subr.mxu0 0.0
        %1704 = vmatpush1.msra.mxu0 0.0
        %1705 = vmatprep.subr.mxu0 0.0
        %1706 = vmatpush1.msra.mxu0 0.0
        %1707 = vmatprep.subr.mxu0 0.0
        %1708 = vmatpush1.msra.mxu0 0.0
        %1709 = vmatprep.subr.mxu0 0.0
        %1710 = vmatpush1.msra.mxu0 0.0
        %1711 = vmatprep.subr.mxu0 0.0
        %1712 = vmatpush1.msra.mxu0 0.0
        %1713 = vmatprep.subr.mxu0 0.0
        %1714 = vmatpush1.msra.mxu0 0.0
        %1715 = vmatprep.subr.mxu0 0.0
        %1716 = vmatpush1.msra.mxu0 0.0
        %1717 = vmatprep.subr.mxu0 0.0
        %1718 = vmatpush1.msra.mxu0 0.0
        %1719 = vmatprep.subr.mxu0 0.0
        %1720 = vmatpush1.msra.mxu0 0.0
        %1721 = vmatprep.subr.mxu0 0.0
        %1722 = vmatpush1.msra.mxu0 0.0
        %1723 = vmatprep.subr.mxu0 0.0
        %1724 = vmatpush1.msra.mxu0 0.0
        %1725 = vmatprep.subr.mxu0 0.0
        %1726 = vmatpush1.msra.mxu0 0.0
        %1727 = vmatprep.subr.mxu0 0.0
        %1728 = vmatpush1.msra.mxu0 0.0
        %1729 = vmatprep.subr.mxu0 0.0
        %1730 = vmatpush1.msra.mxu0 0.0
        %1731 = vmatprep.subr.mxu0 0.0
        %1732 = vmatpush1.msra.mxu0 0.0
        %1733 = vmatprep.subr.mxu0 0.0
        %1734 = vmatpush1.msra.mxu0 0.0
        %1735 = vmatprep.subr.mxu0 0.0
        %1736 = vmatpush1.msra.mxu0 0.0
        %1737 = vmatprep.mubr.f32.mxu0 0.0
        %1738 = vmatmul.mubr.f32.gmra.mrb[0].mxu0 %v1657
        %v1739 = vpop.f32.mrb[0].mxu0
        %v1740 = vadd.f32 0.0, %v1739
        %v1741 = vpop.f32.mrb[0].mxu0
        %1742 = vmatprep.mubr.f32.mxu0 0.0
        %1743 = vmatmul.mubr.f32.gmra.mrb[0].mxu0 %v1659
        %v1744 = vpop.f32.mrb[0].mxu0
        %v1745 = vadd.f32 0.0, %v1744
        %v1746 = vpop.f32.mrb[0].mxu0
        %1747 = vmatprep.mubr.f32.mxu0 0.0
        %1748 = vmatmul.mubr.f32.gmra.mrb[0].mxu0 %v1661
        %v1749 = vpop.f32.mrb[0].mxu0
        %v1750 = vadd.f32 0.0, %v1749
        %v1751 = vpop.f32.mrb[0].mxu0
        %1752 = vmatprep.mubr.f32.mxu0 0.0
        %1753 = vmatmul.mubr.f32.gmra.mrb[0].mxu0 %v1663
        %v1754 = vpop.f32.mrb[0].mxu0
        %v1755 = vadd.f32 0.0, %v1754
        %v1756 = vpop.f32.mrb[0].mxu0
        %1757 = vmatprep.mubr.f32.mxu0 0.0
        %1758 = vmatmul.mubr.f32.gmra.mrb[0].mxu0 %v1665
        %v1759 = vpop.f32.mrb[0].mxu0
        %v1760 = vadd.f32 0.0, %v1759
        %v1761 = vpop.f32.mrb[0].mxu0
        %1762 = vmatprep.mubr.f32.mxu0 0.0
        %1763 = vmatmul.mubr.f32.gmra.mrb[0].mxu0 %v1667
        %v1764 = vpop.f32.mrb[0].mxu0
        %v1765 = vadd.f32 0.0, %v1764
        %v1766 = vpop.f32.mrb[0].mxu0
        %1767 = vmatprep.mubr.f32.mxu0 0.0
        %1768 = vmatmul.mubr.f32.gmra.mrb[0].mxu0 %v1669
        %v1769 = vpop.f32.mrb[0].mxu0
        %v1770 = vadd.f32 0.0, %v1769
        %v1771 = vpop.f32.mrb[0].mxu0
        %1772 = vmatprep.mubr.f32.mxu0 0.0
        %1773 = vmatmul.mubr.f32.gmra.mrb[0].mxu0 %v1671
        %v1774 = vpop.f32.mrb[0].mxu0
        %v1775 = vadd.f32 0.0, %v1774
        %v1776 = vpop.f32.mrb[0].mxu0
        %1777 = vdwg.mxu0
        %1786 = vrot.lane.b32.xlu0 %v1740, 96
        %v1787 = vpop.permute.xlu0 %1786
        %1788 = vrot.lane.b32.xlu0 %v1745, 96
        %v1789 = vpop.permute.xlu0 %1788
        %1790 = vrot.lane.b32.xlu0 %v1750, 96
        %v1791 = vpop.permute.xlu0 %1790
        %1792 = vrot.lane.b32.xlu0 %v1755, 96
        %v1793 = vpop.permute.xlu0 %1792
        %1794 = vrot.lane.b32.xlu0 %v1760, 96
        %v1795 = vpop.permute.xlu0 %1794
        %1796 = vrot.lane.b32.xlu0 %v1765, 96
        %v1797 = vpop.permute.xlu0 %1796
        %1798 = vrot.lane.b32.xlu0 %v1770, 96
        %v1799 = vpop.permute.xlu0 %1798
        %1800 = vrot.lane.b32.xlu0 %v1775, 96
        %v1801 = vpop.permute.xlu0 %1800
        %v1810 = vsub.f32 %v353, %v1787
        %v1811 = vsub.f32 %v358, %v1789
        %v1812 = vsub.f32 %v363, %v1791
        %v1813 = vsub.f32 %v368, %v1793
        %v1814 = vsub.f32 %v373, %v1795
        %v1815 = vsub.f32 %v378, %v1797
        %v1816 = vsub.f32 %v383, %v1799
        %v1817 = vsub.f32 %v388, %v1801
        %v1818 = vmul.f32 %v1810, %v1810
        %v1819 = vmul.f32 %v1811, %v1811
        %v1820 = vmul.f32 %v1812, %v1812
        %v1821 = vmul.f32 %v1813, %v1813
        %v1822 = vmul.f32 %v1814, %v1814
        %v1823 = vmul.f32 %v1815, %v1815
        %v1824 = vmul.f32 %v1816, %v1816
        %v1825 = vmul.f32 %v1817, %v1817
        %1834 = vrot.lane.b32.xlu0 %v1818, 32
        %v1835 = vpop.permute.xlu0 %1834
        %1836 = vrot.lane.b32.xlu0 %v1819, 32
        %v1837 = vpop.permute.xlu0 %1836
        %1838 = vrot.lane.b32.xlu0 %v1820, 32
        %v1839 = vpop.permute.xlu0 %1838
        %1840 = vrot.lane.b32.xlu0 %v1821, 32
        %v1841 = vpop.permute.xlu0 %1840
        %1842 = vrot.lane.b32.xlu0 %v1822, 32
        %v1843 = vpop.permute.xlu0 %1842
        %1844 = vrot.lane.b32.xlu0 %v1823, 32
        %v1845 = vpop.permute.xlu0 %1844
        %1846 = vrot.lane.b32.xlu0 %v1824, 32
        %v1847 = vpop.permute.xlu0 %1846
        %1848 = vrot.lane.b32.xlu0 %v1825, 32
        %v1849 = vpop.permute.xlu0 %1848
        %v1850 = vsel %vm261, %v1835, 0
        %v1852 = vsel %vm261, %v1837, 0
        %v1854 = vsel %vm261, %v1839, 0
        %v1856 = vsel %vm261, %v1841, 0
        %v1858 = vsel %vm261, %v1843, 0
        %v1860 = vsel %vm261, %v1845, 0
        %v1862 = vsel %vm261, %v1847, 0
        %v1864 = vsel %vm261, %v1849, 0
        %1866 = vmatprep.subr.mxu0 0.0
        %1867 = vmatpush1.msra.mxu0 %v1637
        %1868 = vmatprep.subr.mxu0 0.0
        %1869 = vmatpush1.msra.mxu0 %v1638
        %1870 = vmatprep.subr.mxu0 0.0
        %1871 = vmatpush1.msra.mxu0 %v1639
        %1872 = vmatprep.subr.mxu0 0.0
        %1873 = vmatpush1.msra.mxu0 %v1640
        %1874 = vmatprep.subr.mxu0 0.0
        %1875 = vmatpush1.msra.mxu0 0.0
        %1876 = vmatprep.subr.mxu0 0.0
        %1877 = vmatpush1.msra.mxu0 0.0
        %1878 = vmatprep.subr.mxu0 0.0
        %1879 = vmatpush1.msra.mxu0 0.0
        %1880 = vmatprep.subr.mxu0 0.0
        %1881 = vmatpush1.msra.mxu0 0.0
        %1882 = vmatprep.subr.mxu0 0.0
        %1883 = vmatpush1.msra.mxu0 0.0
        %1884 = vmatprep.subr.mxu0 0.0
        %1885 = vmatpush1.msra.mxu0 0.0
        %1886 = vmatprep.subr.mxu0 0.0
        %1887 = vmatpush1.msra.mxu0 0.0
        %1888 = vmatprep.subr.mxu0 0.0
        %1889 = vmatpush1.msra.mxu0 0.0
        %1890 = vmatprep.subr.mxu0 0.0
        %1891 = vmatpush1.msra.mxu0 0.0
        %1892 = vmatprep.subr.mxu0 0.0
        %1893 = vmatpush1.msra.mxu0 0.0
        %1894 = vmatprep.subr.mxu0 0.0
        %1895 = vmatpush1.msra.mxu0 0.0
        %1896 = vmatprep.subr.mxu0 0.0
        %1897 = vmatpush1.msra.mxu0 0.0
        %1898 = vmatprep.subr.mxu0 0.0
        %1899 = vmatpush1.msra.mxu0 0.0
        %1900 = vmatprep.subr.mxu0 0.0
        %1901 = vmatpush1.msra.mxu0 0.0
        %1902 = vmatprep.subr.mxu0 0.0
        %1903 = vmatpush1.msra.mxu0 0.0
        %1904 = vmatprep.subr.mxu0 0.0
        %1905 = vmatpush1.msra.mxu0 0.0
        %1906 = vmatprep.subr.mxu0 0.0
        %1907 = vmatpush1.msra.mxu0 0.0
        %1908 = vmatprep.subr.mxu0 0.0
        %1909 = vmatpush1.msra.mxu0 0.0
        %1910 = vmatprep.subr.mxu0 0.0
        %1911 = vmatpush1.msra.mxu0 0.0
        %1912 = vmatprep.subr.mxu0 0.0
        %1913 = vmatpush1.msra.mxu0 0.0
        %1914 = vmatprep.subr.mxu0 0.0
        %1915 = vmatpush1.msra.mxu0 0.0
        %1916 = vmatprep.subr.mxu0 0.0
        %1917 = vmatpush1.msra.mxu0 0.0
        %1918 = vmatprep.subr.mxu0 0.0
        %1919 = vmatpush1.msra.mxu0 0.0
        %1920 = vmatprep.subr.mxu0 0.0
        %1921 = vmatpush1.msra.mxu0 0.0
        %1922 = vmatprep.subr.mxu0 0.0
        %1923 = vmatpush1.msra.mxu0 0.0
        %1924 = vmatprep.subr.mxu0 0.0
        %1925 = vmatpush1.msra.mxu0 0.0
        %1926 = vmatprep.subr.mxu0 0.0
        %1927 = vmatpush1.msra.mxu0 0.0
        %1928 = vmatprep.subr.mxu0 0.0
        %1929 = vmatpush1.msra.mxu0 0.0
        %1930 = vmatprep.mubr.f32.mxu0 0.0
        %1931 = vmatmul.mubr.f32.gmra.mrb[0].mxu0 %v1850
        %v1932 = vpop.f32.mrb[0].mxu0
        %v1933 = vadd.f32 1e-05, %v1932
        %v1934 = vpop.f32.mrb[0].mxu0
        %1935 = vmatprep.mubr.f32.mxu0 0.0
        %1936 = vmatmul.mubr.f32.gmra.mrb[0].mxu0 %v1852
        %v1937 = vpop.f32.mrb[0].mxu0
        %v1938 = vadd.f32 1e-05, %v1937
        %v1939 = vpop.f32.mrb[0].mxu0
        %1940 = vmatprep.mubr.f32.mxu0 0.0
        %1941 = vmatmul.mubr.f32.gmra.mrb[0].mxu0 %v1854
        %v1942 = vpop.f32.mrb[0].mxu0
        %v1943 = vadd.f32 1e-05, %v1942
        %v1944 = vpop.f32.mrb[0].mxu0
        %1945 = vmatprep.mubr.f32.mxu0 0.0
        %1946 = vmatmul.mubr.f32.gmra.mrb[0].mxu0 %v1856
        %v1947 = vpop.f32.mrb[0].mxu0
        %v1948 = vadd.f32 1e-05, %v1947
        %v1949 = vpop.f32.mrb[0].mxu0
        %1950 = vmatprep.mubr.f32.mxu0 0.0
        %1951 = vmatmul.mubr.f32.gmra.mrb[0].mxu0 %v1858
        %v1952 = vpop.f32.mrb[0].mxu0
        %v1953 = vadd.f32 1e-05, %v1952
        %v1954 = vpop.f32.mrb[0].mxu0
        %1955 = vmatprep.mubr.f32.mxu0 0.0
        %1956 = vmatmul.mubr.f32.gmra.mrb[0].mxu0 %v1860
        %v1957 = vpop.f32.mrb[0].mxu0
        %v1958 = vadd.f32 1e-05, %v1957
        %v1959 = vpop.f32.mrb[0].mxu0
        %1960 = vmatprep.mubr.f32.mxu0 0.0
        %1961 = vmatmul.mubr.f32.gmra.mrb[0].mxu0 %v1862
        %v1962 = vpop.f32.mrb[0].mxu0
        %v1963 = vadd.f32 1e-05, %v1962
        %v1964 = vpop.f32.mrb[0].mxu0
        %1965 = vmatprep.mubr.f32.mxu0 0.0
        %1966 = vmatmul.mubr.f32.gmra.mrb[0].mxu0 %v1864
        %v1967 = vpop.f32.mrb[0].mxu0
        %v1968 = vadd.f32 1e-05, %v1967
        %v1969 = vpop.f32.mrb[0].mxu0
        %1970 = vdwg.mxu0
        %v1971 = vrsqrt.pop %v1933
        %v1972 = vrsqrt.pop %v1938
        %v1973 = vrsqrt.pop %v1943
        %v1974 = vrsqrt.pop %v1948
        %v1975 = vrsqrt.pop %v1953
        %v1976 = vrsqrt.pop %v1958
        %v1977 = vrsqrt.pop %v1963
        %v1978 = vrsqrt.pop %v1968
        %1987 = vrot.lane.b32.xlu0 %v1971, 96
        %v1988 = vpop.permute.xlu0 %1987
        %1989 = vrot.lane.b32.xlu0 %v1972, 96
        %v1990 = vpop.permute.xlu0 %1989
        %1991 = vrot.lane.b32.xlu0 %v1973, 96
        %v1992 = vpop.permute.xlu0 %1991
        %1993 = vrot.lane.b32.xlu0 %v1974, 96
        %v1994 = vpop.permute.xlu0 %1993
        %1995 = vrot.lane.b32.xlu0 %v1975, 96
        %v1996 = vpop.permute.xlu0 %1995
        %1997 = vrot.lane.b32.xlu0 %v1976, 96
        %v1998 = vpop.permute.xlu0 %1997
        %1999 = vrot.lane.b32.xlu0 %v1977, 96
        %v2000 = vpop.permute.xlu0 %1999
        %2001 = vrot.lane.b32.xlu0 %v1978, 96
        %v2002 = vpop.permute.xlu0 %2001
        %v2011 = vmul.f32 %v1810, %v1988
        %v2012 = vmul.f32 %v1811, %v1990
        %v2013 = vmul.f32 %v1812, %v1992
        %v2014 = vmul.f32 %v1813, %v1994
        %v2015 = vmul.f32 %v1814, %v1996
        %v2016 = vmul.f32 %v1815, %v1998
        %v2017 = vmul.f32 %v1816, %v2000
        %v2018 = vmul.f32 %v1817, %v2002
        %v2019 = vld [vmem:[%s3] sm:$0x1]
        %v2021 = vlaneseq
        %v2022 = vshrl.u32 %v2021, 7
        %v2023 = vsub.s32 0, %v2022
        %v2024 = vrot.slane %v2019, %v2023
        %2025 = vrot.lane.b32.xlu0 %v2024, 96
        %v2026 = vpop.permute.xlu0 %2025
        %v2028 = vmul.f32 %v2011, %v2026
        %v2029 = vmul.f32 %v2012, %v2026
        %v2030 = vmul.f32 %v2013, %v2026
        %v2031 = vmul.f32 %v2014, %v2026
        %v2032 = vmul.f32 %v2015, %v2026
        %v2033 = vmul.f32 %v2016, %v2026
        %v2034 = vmul.f32 %v2017, %v2026
        %v2035 = vmul.f32 %v2018, %v2026
        %v2036 = vld [vmem:[%s4] sm:$0x1]
        %v2038 = vlaneseq
        %v2039 = vshrl.u32 %v2038, 7
        %v2040 = vsub.s32 0, %v2039
        %v2041 = vrot.slane %v2036, %v2040
        %2042 = vrot.lane.b32.xlu0 %v2041, 96
        %v2043 = vpop.permute.xlu0 %2042
        %v2045 = vadd.f32 %v2028, %v2043
        %v2046 = vadd.f32 %v2029, %v2043
        %v2047 = vadd.f32 %v2030, %v2043
        %v2048 = vadd.f32 %v2031, %v2043
        %v2049 = vadd.f32 %v2032, %v2043
        %v2050 = vadd.f32 %v2033, %v2043
        %v2051 = vadd.f32 %v2034, %v2043
        %v2052 = vadd.f32 %v2035, %v2043
        %2061 = vrot.lane.b32.xlu0 %v2045, 32
        %v2062 = vpop.permute.xlu0 %2061
        %2063 = vrot.lane.b32.xlu0 %v2046, 32
        %v2064 = vpop.permute.xlu0 %2063
        %2065 = vrot.lane.b32.xlu0 %v2047, 32
        %v2066 = vpop.permute.xlu0 %2065
        %2067 = vrot.lane.b32.xlu0 %v2048, 32
        %v2068 = vpop.permute.xlu0 %2067
        %2069 = vrot.lane.b32.xlu0 %v2049, 32
        %v2070 = vpop.permute.xlu0 %2069
        %2071 = vrot.lane.b32.xlu0 %v2050, 32
        %v2072 = vpop.permute.xlu0 %2071
        %2073 = vrot.lane.b32.xlu0 %v2051, 32
        %v2074 = vpop.permute.xlu0 %2073
        %2075 = vrot.lane.b32.xlu0 %v2052, 32
        %v2076 = vpop.permute.xlu0 %2075
        %s2085 = scalar_lea.vmem %s247, 24
        %2086 = vst.msk [vmem:[%s2085] sm:$0xff] %vm261, %v2062
        %2087 = vst.msk [vmem:[%s2085 + $0x20] sm:$0xff] %vm261, %v2064
        %2088 = vst.msk [vmem:[%s2085 + $0x40] sm:$0xff] %vm261, %v2066
        %2089 = vst.msk [vmem:[%s2085 + $0x60] sm:$0xff] %vm261, %v2068
        %2090 = vst.msk [vmem:[%s2085 + $0x80] sm:$0xff] %vm261, %v2070
        %2091 = vst.msk [vmem:[%s2085 + $0xa0] sm:$0xff] %vm261, %v2072
        %2092 = vst.msk [vmem:[%s2085 + $0xc0] sm:$0xff] %vm261, %v2074
        %2093 = vst.msk [vmem:[%s2085 + $0xe0] sm:$0xff] %vm261, %v2076
        %s2094 = smul.u32 8, %s19
        %p2095 = scmp.lt.s32.totalorder %s2094, 15
        %s2096 = scalar_select %p2095, %s2094, 15
        %s2097 = smul.addr %s2096, 4
        %s2098 = smul.addr %s2097, 8
        %s2099 = scalar_lea.vmem %s5, %s2098
        // Predicated region
        $region45: #{final_patch_expand2d_forward.1} parent=39 // pred_check
          %p2100 = pneg %p147
        $region46: #{final_patch_expand2d_forward.1} parent=39 // pred_check_branch
          %2102 = sbr.rel (%p2100) target = $region48
        $region47: #{final_patch_expand2d_forward.1} parent=39 // pred_region
          %s2103 = smul.u32 8, %s19
        $region48: #{final_patch_expand2d_forward.1} parent=39 // pred_fallthru
          _
      $region40: #{final_patch_expand2d_forward.1} parent=5 // pred_fallthru
        _
      %p2104 = scmp.le.s32.totalorder 2, %s14
      // Predicated region
      $region49: #{final_patch_expand2d_forward.1} parent=5 // pred_check
        %p2105 = pneg %p2104
      $region50: #{final_patch_expand2d_forward.1} parent=5 // pred_check_branch
        %2107 = sbr.rel (%p2105) target = $region52
      $region51: #{final_patch_expand2d_forward.1} parent=5 // pred_region
        %s2108 = ssub.s32 %s14, 2
        // Predicated region
        $region53: #{final_patch_expand2d_forward.1} parent=51 // pred_check
          %p2109 = pneg %p153
        $region54: #{final_patch_expand2d_forward.1} parent=51 // pred_check_branch
          %2111 = sbr.rel (%p2109) target = $region56
        $region55: #{final_patch_expand2d_forward.1} parent=51 // pred_region
          %s2112 = smul.u32 8, %s20
          %p2113 = scmp.lt.s32.totalorder %s2112, 15
          %s2114 = scalar_select %p2113, %s2112, 15
          %s2115 = smul.addr %s2114, 4
          %s2116 = smul.addr %s2115, 8
          %s2117 = scalar_lea.vmem %s5, %s2116
        $region56: #{final_patch_expand2d_forward.1} parent=51 // pred_fallthru
          _
      $region52: #{final_patch_expand2d_forward.1} parent=5 // pred_fallthru
        _
    $region6: #{final_patch_expand2d_forward.1} parent=1 // loop_footer
      %s18 = sadd.s32 1, %s14
    $region7: #{final_patch_expand2d_forward.1} parent=1 // loop_footer_branch
      %13 = sbr.rel target = $region3
    $region8: #{final_patch_expand2d_forward.1} parent=1 // loop_exit
      _
    %2118 = vsyncpa [#allocation3], 1
    %s2119 = scalar_lea.sflag [#allocation3], 1
    %2120 = vsyncpa %s2119, 1

</llo_original>
